<compile_context>
chip_gen: v7x
topology: tpu7x:2x2x1
jax: 0.10.0
libtpu: 0.0.40
codegen_flags: <defaults>
</compile_context>

<pallas_src>
import jax
import jax.numpy as jnp
from jax.experimental import pallas as pl
from jax.experimental.pallas import tpu as pltpu


def _graph_lncloc_kernel(adj_ref, hw1_ref, b1_ref, w2_ref, b2_ref,
                         wg_ref, bg_ref, wc_ref, bc_ref, wl_ref, bl_ref,
                         x1_ref, x2_ref, alpha_ref,
                         x_scr, alpha_scr):
    G, N, _ = adj_ref.shape

    # ---- GraphConv 1 (norm='none', edge_weight) + ReLU, all G graphs at once ----
    # hw1 = h0 @ W1 precomputed in the wrapper (graph-invariant); stacked aggregation:
    # row (g*N + n) of adj_flat is adj[g, n, :], so one [G*N,N] @ [N,H] MXU matmul.
    adj_flat = adj_ref[...].reshape(G * N, N)                           # [G*N, N]
    h1 = jnp.dot(adj_flat, hw1_ref[...], preferred_element_type=jnp.float32)
    h1 = jnp.maximum(h1 + b1_ref[...], 0.0)                             # [G*N, H]

    # ---- GraphConv 2 feature transform (shared W2), all G graphs at once ----
    hw2 = jnp.dot(h1, w2_ref[...], preferred_element_type=jnp.float32)  # [G*N, H]

    # ---- per-graph: conv2 aggregation + GlobalAttentionPooling (unrolled, small G) ----
    for g in range(G):
        adj_g = adj_ref[g]                                              # [N, N] (dst, src)
        hw2_g = hw2[g * N:(g + 1) * N, :]                               # [N, H] (static slice)
        h2_g = jnp.dot(adj_g, hw2_g, preferred_element_type=jnp.float32)
        h2_g = jnp.maximum(h2_g + b2_ref[...], 0.0)                     # [N, H]

        # gate in row form: [1,H] x [N,H] contracting H -> [1,N] (lane-dense softmax)
        gate = jax.lax.dot_general(
            wg_ref[...], h2_g, (((1,), (1,)), ((), ())),
            preferred_element_type=jnp.float32) + bg_ref[...]           # [1, N]
        gmax = jnp.max(gate, axis=-1, keepdims=True)                    # [1, 1]
        e = jnp.exp(gate - gmax)                                        # [1, N]
        inv = pl.reciprocal(jnp.sum(e, axis=-1, keepdims=True), approx=True)
        alpha_scr[pl.ds(g, 1), :] = e * inv                             # [1, N]

        # attention readout on the MXU: [1,N] @ [N,H]
        x_un = jnp.dot(e, h2_g, preferred_element_type=jnp.float32)     # [1, H]
        x_scr[pl.ds(g, 1), :] = x_un * inv

    # lane-dense alpha store (N on lanes)
    alpha_ref[0] = alpha_scr[...]                                       # [G, N]

    # ---- heads, batched over the G pooled graph vectors ----
    x = x_scr[...]                                                      # [G, H]
    x2_ref[0] = jnp.dot(x, wl_ref[...], preferred_element_type=jnp.float32) + bl_ref[...]
    logit = jax.lax.dot_general(
        wc_ref[...], x, (((1,), (1,)), ((), ())),
        preferred_element_type=jnp.float32) + bc_ref[...]               # [1, G]
    x1_ref[0] = jax.nn.sigmoid(logit)


def graph_lncloc2_alpha(emb, adj, params, graphs_per_step=2):
    """emb: [N, D] embedding table; adj: [B, N, N] dense weighted adjacency (dst, src)."""
    (w1, b1, w2, b2, wg, bg, wc, bc, wl, bl) = params
    B, N, _ = adj.shape
    H = w1.shape[1]

    # Pack G graphs per grid step (amortizes per-step pipeline overhead, feeds the
    # MXU larger M); pad the batch so it divides evenly (padded graphs are dropped).
    G = max(1, min(graphs_per_step, B))
    steps = int(pl.cdiv(B, G))
    Bp = steps * G
    if Bp != B:
        adj = jnp.concatenate([adj, jnp.zeros((Bp - B, N, N), adj.dtype)], axis=0)

    # Graph-invariant node transform hoisted out of the kernel.
    hw1 = jnp.dot(emb, w1).astype(jnp.float32)                          # [N, H]
    wg_row = wg.T                                                       # [1, H]
    wc_row = wc.T                                                       # [1, H]

    full = lambda a: pl.BlockSpec(a.shape, lambda i: (0,) * a.ndim)

    out_shapes = (
        jax.ShapeDtypeStruct((steps, 1, G), jnp.float32),               # x1 (row per step)
        jax.ShapeDtypeStruct((steps, G, H), jnp.float32),               # x2
        jax.ShapeDtypeStruct((steps, G, N), jnp.float32),               # alpha (lane-dense)
    )

    flops = Bp * (4 * N * N * H + 2 * N * H * H + 4 * N * H + 2 * H * H + 2 * H)
    cost = pl.CostEstimate(
        flops=int(flops),
        transcendentals=int(Bp * (N + 2)),
        bytes_accessed=int(4 * (Bp * N * N + N * H + 2 * H * H + 6 * H + 2
                                + Bp * (N + H + 1))),
    )

    x1, x2, alpha = pl.pallas_call(
        _graph_lncloc_kernel,
        out_shape=out_shapes,
        grid=(steps,),
        in_specs=[
            pl.BlockSpec((G, N, N), lambda i: (i, 0, 0)),               # G adjacencies per step
            full(hw1), full(b1), full(w2), full(b2),
            full(wg_row), full(bg), full(wc_row), full(bc),
            full(wl), full(bl),
        ],
        out_specs=(
            pl.BlockSpec((1, 1, G), lambda i: (i, 0, 0)),
            pl.BlockSpec((1, G, H), lambda i: (i, 0, 0)),
            pl.BlockSpec((1, G, N), lambda i: (i, 0, 0)),
        ),
        scratch_shapes=[pltpu.VMEM((G, H), jnp.float32),                # pooled x per graph
                        pltpu.VMEM((G, N), jnp.float32)],               # alpha rows per graph
        compiler_params=pltpu.CompilerParams(dimension_semantics=("parallel",)),
        cost_estimate=cost,
    )(adj, hw1, b1, w2, b2, wg_row, bg, wc_row, bc, wl, bl)

    # Match PyTorch output conventions (and drop padded graphs).
    x1 = x1.reshape(Bp)[:B]
    x2 = x2.reshape(Bp, H)[:B]
    alpha = alpha.reshape(Bp, N)[:B].reshape(B * N, 1)
    return x1, x2, alpha


def _reference(emb, adj, params):
    (w1, b1, w2, b2, wg, bg, wc, bc, wl, bl) = params
    B, N, _ = adj.shape
    h0 = jnp.broadcast_to(emb[None], (B, N, emb.shape[1]))
    h1 = jax.nn.relu(jnp.einsum("bnm,bmh->bnh", adj, h0 @ w1) + b1)
    h2 = jax.nn.relu(jnp.einsum("bnm,bmh->bnh", adj, h1 @ w2) + b2)
    gate = h2 @ wg + bg                                     # [B, N, 1]
    alpha = jax.nn.softmax(gate, axis=1)
    x = jnp.sum(alpha * h2, axis=1)                         # [B, H]
    x1 = jax.nn.sigmoid(x @ wc + bc).squeeze(1)
    x2 = x @ wl + bl
    return x1, x2, alpha.reshape(B * N, 1)


if __name__ == "__main__":
    # kmer=2 -> N = 4**2 = 16 nodes/graph, in_dim d = 32, hidden_dim = 32.
    # B=3 with G=2 graphs/step exercises the batch-padding path (2 grid steps).
    KMER = 2
    N = 4 ** KMER
    D = 32
    H = 32
    B = 3

    key = jax.random.PRNGKey(0)
    ks = jax.random.split(key, 12)

    emb = jax.random.normal(ks[0], (N, D), jnp.float32) * 0.5
    # Dense weighted adjacency adj[b, dst, src]; sparse-ish nonnegative weights.
    mask = (jax.random.uniform(ks[1], (B, N, N)) < 0.3).astype(jnp.float32)
    adj = jax.random.uniform(ks[2], (B, N, N), jnp.float32) * mask

    def lin_init(k, fan_in, shape):
        return jax.random.uniform(k, shape, jnp.float32,
                                  minval=-1.0, maxval=1.0) / jnp.sqrt(fan_in)

    params = (
        lin_init(ks[3], D, (D, H)), lin_init(ks[4], D, (1, H)),     # conv1 W, b
        lin_init(ks[5], H, (H, H)), lin_init(ks[6], H, (1, H)),     # conv2 W, b
        lin_init(ks[7], H, (H, 1)), lin_init(ks[8], H, (1, 1)),     # gate  W, b
        lin_init(ks[9], H, (H, 1)), lin_init(ks[10], H, (1, 1)),    # classify W, b
        lin_init(ks[11], H, (H, H)), jnp.zeros((1, H), jnp.float32),  # lin W, b
    )

    x1, x2, alpha = graph_lncloc2_alpha(emb, adj, params, graphs_per_step=2)
    jax.block_until_ready((x1, x2, alpha))

    # Correctness check against a pure-JAX reference of the same math.
    # Tolerance loosened slightly because the softmax denominator uses the EUP
    # approximate reciprocal (pl.reciprocal(approx=True)).
    r1, r2, ra = _reference(emb, adj, params)
    assert jnp.allclose(x1, r1, atol=5e-3, rtol=5e-3), "x1 mismatch"
    assert jnp.allclose(x2, r2, atol=5e-3, rtol=5e-3), "x2 mismatch"
    assert jnp.allclose(alpha, ra, atol=5e-3, rtol=5e-3), "alpha mismatch"

    print("KERNEL_OK")
</pallas_src>

<mosaic_0001>
module attributes {stable_mosaic.version = 11 : i64} {
  func.func @_graph_lncloc_kernel(%arg0: i32, %arg1: memref<2x16x16xf32, #tpu.memory_space<vmem>>, %arg2: memref<16x32xf32, #tpu.memory_space<vmem>>, %arg3: memref<1x32xf32, #tpu.memory_space<vmem>>, %arg4: memref<32x32xf32, #tpu.memory_space<vmem>>, %arg5: memref<1x32xf32, #tpu.memory_space<vmem>>, %arg6: memref<1x32xf32, #tpu.memory_space<vmem>>, %arg7: memref<1x1xf32, #tpu.memory_space<vmem>>, %arg8: memref<1x32xf32, #tpu.memory_space<vmem>>, %arg9: memref<1x1xf32, #tpu.memory_space<vmem>>, %arg10: memref<32x32xf32, #tpu.memory_space<vmem>>, %arg11: memref<1x32xf32, #tpu.memory_space<vmem>>, %arg12: memref<1x1x2xf32, #tpu.memory_space<vmem>>, %arg13: memref<1x2x32xf32, #tpu.memory_space<vmem>>, %arg14: memref<1x2x16xf32, #tpu.memory_space<vmem>>, %arg15: memref<2x32xf32, #tpu.memory_space<vmem>>, %arg16: memref<2x16xf32, #tpu.memory_space<vmem>>) attributes {dimension_semantics = [#tpu.dimension_semantics<parallel>], iteration_bounds = array<i64: 2>, scalar_prefetch = 0 : i64, scratch_operands = 2 : i64, tpu.core_type = #tpu.core_type<tc>, window_params = [{transform_indices = @transform_0, window_bounds = array<i64: 2, 16, 16>}, {pipeline_mode = #tpu.pipeline_mode<synchronous>, transform_indices = @transform_1, window_bounds = array<i64: 16, 32>}, {pipeline_mode = #tpu.pipeline_mode<synchronous>, transform_indices = @transform_2, window_bounds = array<i64: 1, 32>}, {pipeline_mode = #tpu.pipeline_mode<synchronous>, transform_indices = @transform_3, window_bounds = array<i64: 32, 32>}, {pipeline_mode = #tpu.pipeline_mode<synchronous>, transform_indices = @transform_4, window_bounds = array<i64: 1, 32>}, {pipeline_mode = #tpu.pipeline_mode<synchronous>, transform_indices = @transform_5, window_bounds = array<i64: 1, 32>}, {pipeline_mode = #tpu.pipeline_mode<synchronous>, transform_indices = @transform_6, window_bounds = array<i64: 1, 1>}, {pipeline_mode = #tpu.pipeline_mode<synchronous>, transform_indices = @transform_7, window_bounds = array<i64: 1, 32>}, {pipeline_mode = #tpu.pipeline_mode<synchronous>, transform_indices = @transform_8, window_bounds = array<i64: 1, 1>}, {pipeline_mode = #tpu.pipeline_mode<synchronous>, transform_indices = @transform_9, window_bounds = array<i64: 32, 32>}, {pipeline_mode = #tpu.pipeline_mode<synchronous>, transform_indices = @transform_10, window_bounds = array<i64: 1, 32>}, {transform_indices = @transform_11, window_bounds = array<i64: 1, 1, 2>}, {transform_indices = @transform_12, window_bounds = array<i64: 1, 2, 32>}, {transform_indices = @transform_13, window_bounds = array<i64: 1, 2, 16>}]} {
    %c0 = arith.constant 0 : index
    %c0_0 = arith.constant 0 : index
    %c0_1 = arith.constant 0 : index
    %0 = vector.load %arg1[%c0, %c0_0, %c0_1] : memref<2x16x16xf32, #tpu.memory_space<vmem>>, vector<2x16x16xf32>
    %1 = vector.shape_cast %0 : vector<2x16x16xf32> to vector<32x16xf32>
    %c0_2 = arith.constant 0 : index
    %c0_3 = arith.constant 0 : index
    %2 = vector.load %arg2[%c0_2, %c0_3] : memref<16x32xf32, #tpu.memory_space<vmem>>, vector<16x32xf32>
    %cst = arith.constant dense<0.000000e+00> : vector<32x32xf32>
    %3 = tpu.matmul %1, %2, %cst {dimension_numbers = #tpu.dot_dimension_numbers<[1], [0], [0], [1], [0, 0, 1, 1], [], []>} : vector<32x16xf32>, vector<16x32xf32>, vector<32x32xf32> -> vector<32x32xf32>
    %c0_4 = arith.constant 0 : index
    %c0_5 = arith.constant 0 : index
    %4 = vector.load %arg3[%c0_4, %c0_5] : memref<1x32xf32, #tpu.memory_space<vmem>>, vector<1x32xf32>
    %5 = vector.broadcast %4 : vector<1x32xf32> to vector<32x32xf32>
    %6 = arith.addf %3, %5 : vector<32x32xf32>
    %cst_6 = arith.constant 0.000000e+00 : f32
    %7 = vector.broadcast %cst_6 : f32 to vector<32x32xf32>
    %8 = arith.maximumf %6, %7 : vector<32x32xf32>
    %c0_7 = arith.constant 0 : index
    %c0_8 = arith.constant 0 : index
    %9 = vector.load %arg4[%c0_7, %c0_8] : memref<32x32xf32, #tpu.memory_space<vmem>>, vector<32x32xf32>
    %cst_9 = arith.constant dense<0.000000e+00> : vector<32x32xf32>
    %10 = tpu.matmul %8, %9, %cst_9 {dimension_numbers = #tpu.dot_dimension_numbers<[1], [0], [0], [1], [0, 0, 1, 1], [], []>} : vector<32x32xf32>, vector<32x32xf32>, vector<32x32xf32> -> vector<32x32xf32>
    %c0_10 = arith.constant 0 : index
    %c0_11 = arith.constant 0 : index
    %c0_12 = arith.constant 0 : index
    %11 = vector.load %arg1[%c0_10, %c0_11, %c0_12] : memref<2x16x16xf32, #tpu.memory_space<vmem>>, vector<1x16x16xf32>
    %12 = vector.shape_cast %11 : vector<1x16x16xf32> to vector<16x16xf32>
    %13 = vector.extract_strided_slice %10 {offsets = [0, 0], sizes = [16, 32], strides = [1, 1]} : vector<32x32xf32> to vector<16x32xf32>
    %cst_13 = arith.constant dense<0.000000e+00> : vector<16x32xf32>
    %14 = tpu.matmul %12, %13, %cst_13 {dimension_numbers = #tpu.dot_dimension_numbers<[1], [0], [0], [1], [0, 0, 1, 1], [], []>} : vector<16x16xf32>, vector<16x32xf32>, vector<16x32xf32> -> vector<16x32xf32>
    %c0_14 = arith.constant 0 : index
    %c0_15 = arith.constant 0 : index
    %15 = vector.load %arg5[%c0_14, %c0_15] : memref<1x32xf32, #tpu.memory_space<vmem>>, vector<1x32xf32>
    %16 = vector.broadcast %15 : vector<1x32xf32> to vector<16x32xf32>
    %17 = arith.addf %14, %16 : vector<16x32xf32>
    %cst_16 = arith.constant 0.000000e+00 : f32
    %18 = vector.broadcast %cst_16 : f32 to vector<16x32xf32>
    %19 = arith.maximumf %17, %18 : vector<16x32xf32>
    %c0_17 = arith.constant 0 : index
    %c0_18 = arith.constant 0 : index
    %20 = vector.load %arg6[%c0_17, %c0_18] : memref<1x32xf32, #tpu.memory_space<vmem>>, vector<1x32xf32>
    %cst_19 = arith.constant dense<0.000000e+00> : vector<1x16xf32>
    %21 = tpu.matmul %20, %19, %cst_19 {dimension_numbers = #tpu.dot_dimension_numbers<[1], [1], [0], [0], [0, 0, 1, 0], [], []>} : vector<1x32xf32>, vector<16x32xf32>, vector<1x16xf32> -> vector<1x16xf32>
    %c0_20 = arith.constant 0 : index
    %c0_21 = arith.constant 0 : index
    %22 = vector.load %arg7[%c0_20, %c0_21] : memref<1x1xf32, #tpu.memory_space<vmem>>, vector<1x1xf32>
    %23 = vector.broadcast %22 : vector<1x1xf32> to vector<1x16xf32>
    %24 = arith.addf %21, %23 : vector<1x16xf32>
    %cst_22 = arith.constant dense<0xFF800000> : vector<1xf32>
    %25 = vector.multi_reduction <maximumf>, %24, %cst_22 [1] : vector<1x16xf32> to vector<1xf32>
    %26 = vector.shape_cast %25 : vector<1xf32> to vector<1x1xf32>
    %27 = vector.broadcast %26 : vector<1x1xf32> to vector<1x16xf32>
    %28 = arith.subf %24, %27 : vector<1x16xf32>
    %29 = math.exp %28 : vector<1x16xf32>
    %cst_23 = arith.constant dense<0.000000e+00> : vector<1xf32>
    %30 = vector.multi_reduction <add>, %29, %cst_23 [1] : vector<1x16xf32> to vector<1xf32>
    %31 = vector.shape_cast %30 : vector<1xf32> to vector<1x1xf32>
    %32 = tpu.reciprocal %31 {approx = true} : vector<1x1xf32> -> vector<1x1xf32>
    %33 = vector.broadcast %32 : vector<1x1xf32> to vector<1x16xf32>
    %34 = arith.mulf %29, %33 : vector<1x16xf32>
    %c0_24 = arith.constant 0 : index
    %c0_25 = arith.constant 0 : index
    %35 = vector.load %arg16[%c0_24, %c0_25] : memref<2x16xf32, #tpu.memory_space<vmem>>, vector<1x16xf32>
    tpu.vector_store %arg16[%c0_24, %c0_25], %34 {strides = array<i32>} : memref<2x16xf32, #tpu.memory_space<vmem>>, vector<1x16xf32>,
    %cst_26 = arith.constant dense<0.000000e+00> : vector<1x32xf32>
    %36 = tpu.matmul %29, %19, %cst_26 {dimension_numbers = #tpu.dot_dimension_numbers<[1], [0], [0], [1], [0, 0, 1, 1], [], []>} : vector<1x16xf32>, vector<16x32xf32>, vector<1x32xf32> -> vector<1x32xf32>
    %37 = vector.broadcast %32 : vector<1x1xf32> to vector<1x32xf32>
    %38 = arith.mulf %36, %37 : vector<1x32xf32>
    %c0_27 = arith.constant 0 : index
    %c0_28 = arith.constant 0 : index
    %39 = vector.load %arg15[%c0_27, %c0_28] : memref<2x32xf32, #tpu.memory_space<vmem>>, vector<1x32xf32>
    tpu.vector_store %arg15[%c0_27, %c0_28], %38 {strides = array<i32>} : memref<2x32xf32, #tpu.memory_space<vmem>>, vector<1x32xf32>,
    %c1 = arith.constant 1 : index
    %c0_29 = arith.constant 0 : index
    %c0_30 = arith.constant 0 : index
    %40 = vector.load %arg1[%c1, %c0_29, %c0_30] : memref<2x16x16xf32, #tpu.memory_space<vmem>>, vector<1x16x16xf32>
    %41 = vector.shape_cast %40 : vector<1x16x16xf32> to vector<16x16xf32>
    %42 = vector.extract_strided_slice %10 {offsets = [16, 0], sizes = [16, 32], strides = [1, 1]} : vector<32x32xf32> to vector<16x32xf32>
    %cst_31 = arith.constant dense<0.000000e+00> : vector<16x32xf32>
    %43 = tpu.matmul %41, %42, %cst_31 {dimension_numbers = #tpu.dot_dimension_numbers<[1], [0], [0], [1], [0, 0, 1, 1], [], []>} : vector<16x16xf32>, vector<16x32xf32>, vector<16x32xf32> -> vector<16x32xf32>
    %c0_32 = arith.constant 0 : index
    %c0_33 = arith.constant 0 : index
    %44 = vector.load %arg5[%c0_32, %c0_33] : memref<1x32xf32, #tpu.memory_space<vmem>>, vector<1x32xf32>
    %45 = vector.broadcast %44 : vector<1x32xf32> to vector<16x32xf32>
    %46 = arith.addf %43, %45 : vector<16x32xf32>
    %cst_34 = arith.constant 0.000000e+00 : f32
    %47 = vector.broadcast %cst_34 : f32 to vector<16x32xf32>
    %48 = arith.maximumf %46, %47 : vector<16x32xf32>
    %c0_35 = arith.constant 0 : index
    %c0_36 = arith.constant 0 : index
    %49 = vector.load %arg6[%c0_35, %c0_36] : memref<1x32xf32, #tpu.memory_space<vmem>>, vector<1x32xf32>
    %cst_37 = arith.constant dense<0.000000e+00> : vector<1x16xf32>
    %50 = tpu.matmul %49, %48, %cst_37 {dimension_numbers = #tpu.dot_dimension_numbers<[1], [1], [0], [0], [0, 0, 1, 0], [], []>} : vector<1x32xf32>, vector<16x32xf32>, vector<1x16xf32> -> vector<1x16xf32>
    %c0_38 = arith.constant 0 : index
    %c0_39 = arith.constant 0 : index
    %51 = vector.load %arg7[%c0_38, %c0_39] : memref<1x1xf32, #tpu.memory_space<vmem>>, vector<1x1xf32>
    %52 = vector.broadcast %51 : vector<1x1xf32> to vector<1x16xf32>
    %53 = arith.addf %50, %52 : vector<1x16xf32>
    %cst_40 = arith.constant dense<0xFF800000> : vector<1xf32>
    %54 = vector.multi_reduction <maximumf>, %53, %cst_40 [1] : vector<1x16xf32> to vector<1xf32>
    %55 = vector.shape_cast %54 : vector<1xf32> to vector<1x1xf32>
    %56 = vector.broadcast %55 : vector<1x1xf32> to vector<1x16xf32>
    %57 = arith.subf %53, %56 : vector<1x16xf32>
    %58 = math.exp %57 : vector<1x16xf32>
    %cst_41 = arith.constant dense<0.000000e+00> : vector<1xf32>
    %59 = vector.multi_reduction <add>, %58, %cst_41 [1] : vector<1x16xf32> to vector<1xf32>
    %60 = vector.shape_cast %59 : vector<1xf32> to vector<1x1xf32>
    %61 = tpu.reciprocal %60 {approx = true} : vector<1x1xf32> -> vector<1x1xf32>
    %62 = vector.broadcast %61 : vector<1x1xf32> to vector<1x16xf32>
    %63 = arith.mulf %58, %62 : vector<1x16xf32>
    %c1_42 = arith.constant 1 : index
    %c0_43 = arith.constant 0 : index
    %64 = vector.load %arg16[%c1_42, %c0_43] : memref<2x16xf32, #tpu.memory_space<vmem>>, vector<1x16xf32>
    tpu.vector_store %arg16[%c1_42, %c0_43], %63 {strides = array<i32>} : memref<2x16xf32, #tpu.memory_space<vmem>>, vector<1x16xf32>,
    %cst_44 = arith.constant dense<0.000000e+00> : vector<1x32xf32>
    %65 = tpu.matmul %58, %48, %cst_44 {dimension_numbers = #tpu.dot_dimension_numbers<[1], [0], [0], [1], [0, 0, 1, 1], [], []>} : vector<1x16xf32>, vector<16x32xf32>, vector<1x32xf32> -> vector<1x32xf32>
    %66 = vector.broadcast %61 : vector<1x1xf32> to vector<1x32xf32>
    %67 = arith.mulf %65, %66 : vector<1x32xf32>
    %c1_45 = arith.constant 1 : index
    %c0_46 = arith.constant 0 : index
    %68 = vector.load %arg15[%c1_45, %c0_46] : memref<2x32xf32, #tpu.memory_space<vmem>>, vector<1x32xf32>
    tpu.vector_store %arg15[%c1_45, %c0_46], %67 {strides = array<i32>} : memref<2x32xf32, #tpu.memory_space<vmem>>, vector<1x32xf32>,
    %c0_47 = arith.constant 0 : index
    %c0_48 = arith.constant 0 : index
    %69 = vector.load %arg16[%c0_47, %c0_48] : memref<2x16xf32, #tpu.memory_space<vmem>>, vector<2x16xf32>
    %c0_49 = arith.constant 0 : index
    %c0_50 = arith.constant 0 : index
    %c0_51 = arith.constant 0 : index
    %70 = vector.load %arg14[%c0_49, %c0_50, %c0_51] : memref<1x2x16xf32, #tpu.memory_space<vmem>>, vector<1x2x16xf32>
    %71 = vector.shape_cast %70 : vector<1x2x16xf32> to vector<2x16xf32>
    %72 = vector.shape_cast %69 : vector<2x16xf32> to vector<1x2x16xf32>
    tpu.vector_store %arg14[%c0_49, %c0_50, %c0_51], %72 {strides = array<i32>} : memref<1x2x16xf32, #tpu.memory_space<vmem>>, vector<1x2x16xf32>,
    %c0_52 = arith.constant 0 : index
    %c0_53 = arith.constant 0 : index
    %73 = vector.load %arg15[%c0_52, %c0_53] : memref<2x32xf32, #tpu.memory_space<vmem>>, vector<2x32xf32>
    %c0_54 = arith.constant 0 : index
    %c0_55 = arith.constant 0 : index
    %74 = vector.load %arg10[%c0_54, %c0_55] : memref<32x32xf32, #tpu.memory_space<vmem>>, vector<32x32xf32>
    %cst_56 = arith.constant dense<0.000000e+00> : vector<2x32xf32>
    %75 = tpu.matmul %73, %74, %cst_56 {dimension_numbers = #tpu.dot_dimension_numbers<[1], [0], [0], [1], [0, 0, 1, 1], [], []>} : vector<2x32xf32>, vector<32x32xf32>, vector<2x32xf32> -> vector<2x32xf32>
    %c0_57 = arith.constant 0 : index
    %c0_58 = arith.constant 0 : index
    %76 = vector.load %arg11[%c0_57, %c0_58] : memref<1x32xf32, #tpu.memory_space<vmem>>, vector<1x32xf32>
    %77 = vector.broadcast %76 : vector<1x32xf32> to vector<2x32xf32>
    %78 = arith.addf %75, %77 : vector<2x32xf32>
    %c0_59 = arith.constant 0 : index
    %c0_60 = arith.constant 0 : index
    %c0_61 = arith.constant 0 : index
    %79 = vector.load %arg13[%c0_59, %c0_60, %c0_61] : memref<1x2x32xf32, #tpu.memory_space<vmem>>, vector<1x2x32xf32>
    %80 = vector.shape_cast %79 : vector<1x2x32xf32> to vector<2x32xf32>
    %81 = vector.shape_cast %78 : vector<2x32xf32> to vector<1x2x32xf32>
    tpu.vector_store %arg13[%c0_59, %c0_60, %c0_61], %81 {strides = array<i32>} : memref<1x2x32xf32, #tpu.memory_space<vmem>>, vector<1x2x32xf32>,
    %c0_62 = arith.constant 0 : index
    %c0_63 = arith.constant 0 : index
    %82 = vector.load %arg8[%c0_62, %c0_63] : memref<1x32xf32, #tpu.memory_space<vmem>>, vector<1x32xf32>
    %cst_64 = arith.constant dense<0.000000e+00> : vector<1x2xf32>
    %83 = tpu.matmul %82, %73, %cst_64 {dimension_numbers = #tpu.dot_dimension_numbers<[1], [1], [0], [0], [0, 0, 1, 0], [], []>} : vector<1x32xf32>, vector<2x32xf32>, vector<1x2xf32> -> vector<1x2xf32>
    %c0_65 = arith.constant 0 : index
    %c0_66 = arith.constant 0 : index
    %84 = vector.load %arg9[%c0_65, %c0_66] : memref<1x1xf32, #tpu.memory_space<vmem>>, vector<1x1xf32>
    %85 = vector.broadcast %84 : vector<1x1xf32> to vector<1x2xf32>
    %86 = arith.addf %83, %85 : vector<1x2xf32>
    %87 = arith.negf %86 : vector<1x2xf32>
    %88 = math.exp %87 : vector<1x2xf32>
    %cst_67 = arith.constant 1.000000e+00 : f32
    %89 = vector.broadcast %cst_67 : f32 to vector<1x2xf32>
    %90 = arith.addf %89, %88 : vector<1x2xf32>
    %91 = arith.divf %89, %90 : vector<1x2xf32>
    %c0_68 = arith.constant 0 : index
    %c0_69 = arith.constant 0 : index
    %c0_70 = arith.constant 0 : index
    %92 = vector.load %arg12[%c0_68, %c0_69, %c0_70] : memref<1x1x2xf32, #tpu.memory_space<vmem>>, vector<1x1x2xf32>
    %93 = vector.shape_cast %92 : vector<1x1x2xf32> to vector<1x2xf32>
    %94 = vector.shape_cast %91 : vector<1x2xf32> to vector<1x1x2xf32>
    tpu.vector_store %arg12[%c0_68, %c0_69, %c0_70], %94 {strides = array<i32>} : memref<1x1x2xf32, #tpu.memory_space<vmem>>, vector<1x1x2xf32>,
    return
  }
  func.func @transform_0(%arg0: i32) -> (i32, i32, i32) {
    %c0_i32 = arith.constant 0 : i32
    %c0_i32_0 = arith.constant 0 : i32
    %c0_i32_1 = arith.constant 0 : i32
    return %arg0, %c0_i32, %c0_i32_0 : i32, i32, i32
  }
  func.func @transform_1(%arg0: i32) -> (i32, i32) {
    %c0_i32 = arith.constant 0 : i32
    %c0_i32_0 = arith.constant 0 : i32
    %c0_i32_1 = arith.constant 0 : i32
    return %c0_i32, %c0_i32_0 : i32, i32
  }
  func.func @transform_2(%arg0: i32) -> (i32, i32) {
    %c0_i32 = arith.constant 0 : i32
    %c0_i32_0 = arith.constant 0 : i32
    %c0_i32_1 = arith.constant 0 : i32
    return %c0_i32, %c0_i32_0 : i32, i32
  }
  func.func @transform_3(%arg0: i32) -> (i32, i32) {
    %c0_i32 = arith.constant 0 : i32
    %c0_i32_0 = arith.constant 0 : i32
    %c0_i32_1 = arith.constant 0 : i32
    return %c0_i32, %c0_i32_0 : i32, i32
  }
  func.func @transform_4(%arg0: i32) -> (i32, i32) {
    %c0_i32 = arith.constant 0 : i32
    %c0_i32_0 = arith.constant 0 : i32
    %c0_i32_1 = arith.constant 0 : i32
    return %c0_i32, %c0_i32_0 : i32, i32
  }
  func.func @transform_5(%arg0: i32) -> (i32, i32) {
    %c0_i32 = arith.constant 0 : i32
    %c0_i32_0 = arith.constant 0 : i32
    %c0_i32_1 = arith.constant 0 : i32
    return %c0_i32, %c0_i32_0 : i32, i32
  }
  func.func @transform_6(%arg0: i32) -> (i32, i32) {
    %c0_i32 = arith.constant 0 : i32
    %c0_i32_0 = arith.constant 0 : i32
    %c0_i32_1 = arith.constant 0 : i32
    return %c0_i32, %c0_i32_0 : i32, i32
  }
  func.func @transform_7(%arg0: i32) -> (i32, i32) {
    %c0_i32 = arith.constant 0 : i32
    %c0_i32_0 = arith.constant 0 : i32
    %c0_i32_1 = arith.constant 0 : i32
    return %c0_i32, %c0_i32_0 : i32, i32
  }
  func.func @transform_8(%arg0: i32) -> (i32, i32) {
    %c0_i32 = arith.constant 0 : i32
    %c0_i32_0 = arith.constant 0 : i32
    %c0_i32_1 = arith.constant 0 : i32
    return %c0_i32, %c0_i32_0 : i32, i32
  }
  func.func @transform_9(%arg0: i32) -> (i32, i32) {
    %c0_i32 = arith.constant 0 : i32
    %c0_i32_0 = arith.constant 0 : i32
    %c0_i32_1 = arith.constant 0 : i32
    return %c0_i32, %c0_i32_0 : i32, i32
  }
  func.func @transform_10(%arg0: i32) -> (i32, i32) {
    %c0_i32 = arith.constant 0 : i32
    %c0_i32_0 = arith.constant 0 : i32
    %c0_i32_1 = arith.constant 0 : i32
    return %c0_i32, %c0_i32_0 : i32, i32
  }
  func.func @transform_11(%arg0: i32) -> (i32, i32, i32) {
    %c0_i32 = arith.constant 0 : i32
    %c0_i32_0 = arith.constant 0 : i32
    %c0_i32_1 = arith.constant 0 : i32
    return %arg0, %c0_i32, %c0_i32_0 : i32, i32, i32
  }
  func.func @transform_12(%arg0: i32) -> (i32, i32, i32) {
    %c0_i32 = arith.constant 0 : i32
    %c0_i32_0 = arith.constant 0 : i32
    %c0_i32_1 = arith.constant 0 : i32
    return %arg0, %c0_i32, %c0_i32_0 : i32, i32, i32
  }
  func.func @transform_13(%arg0: i32) -> (i32, i32, i32) {
    %c0_i32 = arith.constant 0 : i32
    %c0_i32_0 = arith.constant 0 : i32
    %c0_i32_1 = arith.constant 0 : i32
    return %arg0, %c0_i32, %c0_i32_0 : i32, i32, i32
  }
}

</mosaic_0001>

<llo_original>
// kernel: tpu_custom_call.1
$region0: #{tpu_custom_call.1}
  #allocation0 [shape = 'u32[]', space=smem, size = 0x4, offset = 0x4, fixed_abs, tag = 'smem constant byte address 0x4 - core index']
  #allocation1 [shape = 'u32[144,128]{1,0:T(1,128)}', space=vmem, size = 0x12000, scoped, tag = 'internal scratch']
  #allocation2 [shape = 'f32[2,32]{1,0:T(2,128)}', space=vmem, size = 0x400, scoped, tag = 'scratch operand']
  #allocation3 [shape = 'f32[2,16]{1,0:T(2,128)}', space=vmem, size = 0x400, scoped, tag = 'scratch operand']
  #allocation4 [shape = 'f32[1,1]{1,0:T(1,128)S(1)}', space=vmem, size = 0x200, scoped, tag = 'scoped memory for tpu_custom_call.1']
  #allocation5 [shape = 'f32[1,1]{1,0:T(1,128)S(1)}', space=vmem, size = 0x200, scoped, tag = 'scoped memory for tpu_custom_call.1']
  %s0 = inlined_call_operand.hbm [shape: f32[4,16,16], index: 0, kind: input, shape index: {}]
  %s1 = inlined_call_operand.hbm [shape: f32[16,32], index: 1, kind: input, shape index: {}]
  %s2 = inlined_call_operand.vmem [shape: f32[1,32], index: 2, kind: input, shape index: {}]
  %s3 = inlined_call_operand.hbm [shape: f32[32,32], index: 3, kind: input, shape index: {}]
  %s4 = inlined_call_operand.vmem [shape: f32[1,32], index: 4, kind: input, shape index: {}]
  %s5 = inlined_call_operand.hbm [shape: f32[1,32], index: 5, kind: input, shape index: {}]
  %s6 = inlined_call_operand.<no memory space> [shape: f32[1,1], index: 6, kind: input, shape index: {}]
  %s7 = inlined_call_operand.hbm [shape: f32[1,32], index: 7, kind: input, shape index: {}]
  %s8 = inlined_call_operand.<no memory space> [shape: f32[1,1], index: 8, kind: input, shape index: {}]
  %s9 = inlined_call_operand.vmem [shape: f32[32,32], index: 9, kind: input, shape index: {}]
  %s10 = inlined_call_operand.vmem [shape: f32[1,32], index: 10, kind: input, shape index: {}]
  %s11 = inlined_call_operand.hbm [shape: f32[2,1,2], index: 11, kind: output, shape index: {0}]
  %s12 = inlined_call_operand.hbm [shape: f32[2,2,32], index: 12, kind: output, shape index: {1}]
  %s13 = inlined_call_operand.hbm [shape: f32[2,2,16], index: 13, kind: output, shape index: {2}]
  %14 = xla_tuple %s11, %s12, %s13
  %s15 = sld [smem:[#allocation0]]
  $region113: #{tpu_custom_call.1} parent=0
    _
  %s17 = ssub.s32 1, %s15
  %s18 = scalar_select 0, %s17, %s15
  %v19 = vstv %s6
  %20 = vst [vmem:[#allocation4] sm:$0x1] %v19
  %v21 = vstv %s8
  %22 = vst [vmem:[#allocation5] sm:$0x1] %v21
  $region1: #{tpu_custom_call.1} parent=0
    #allocation6 [shape = 'u8[32768]{0}', space=vmem, size = 0x8000, scoped, tag = 'input window, operand 0']
    #allocation7 [shape = 's32[2]{0}', space=sflag, size = 0x8, scoped, tag = 'scoped memory for tpu_custom_call.1']
    #allocation8 [shape = 's32[2]{0}', space=sflag, size = 0x8, scoped, tag = 'scoped memory for tpu_custom_call.1']
    #allocation9 [shape = 'u8[8192]{0}', space=vmem, size = 0x2000, scoped, tag = 'input window, operand 1, single buffered']
    #allocation10 [shape = 's32[1]{0}', space=sflag, size = 0x4, scoped, tag = 'scoped memory for tpu_custom_call.1']
    #allocation11 [shape = 'u8[16384]{0}', space=vmem, size = 0x4000, scoped, tag = 'input window, operand 3, single buffered']
    #allocation12 [shape = 'u8[512]{0}', space=vmem, size = 0x400, scoped, tag = 'input window, operand 5, single buffered']
    #allocation13 [shape = 's32[1]{0}', space=sflag, size = 0x4, scoped, tag = 'scoped memory for tpu_custom_call.1']
    #allocation14 [shape = 'u8[512]{0}', space=vmem, size = 0x400, scoped, tag = 'input window, operand 7, single buffered']
    #allocation15 [shape = 'u8[1024]{0}', space=vmem, size = 0x400, scoped, tag = 'output window, operand 0']
    #allocation16 [shape = 'u8[2048]{0}', space=vmem, size = 0x800, scoped, tag = 'output window, operand 1']
    #allocation17 [shape = 's32[2]{0}', space=sflag, size = 0x8, scoped, tag = 'scoped memory for tpu_custom_call.1']
    #allocation18 [shape = 'u8[2048]{0}', space=vmem, size = 0x800, scoped, tag = 'output window, operand 2']
    %23 = vsyncpa [#allocation7], 0
    %s24 = scalar_lea.sflag [#allocation7], 1
    %25 = vsyncpa %s24, 0
    %26 = vsyncpa [#allocation10], 0
    %27 = vsyncpa [#allocation13], 0
    %28 = vsyncpa [#allocation8], 0
    %s29 = scalar_lea.sflag [#allocation8], 1
    %30 = vsyncpa %s29, 0
    %31 = vsyncpa [#allocation17], 0
    %s32 = scalar_lea.sflag [#allocation17], 1
    %33 = vsyncpa %s32, 0
    loop: start=0, step=1, limit=4
    $region2: #{tpu_custom_call.1} parent=1 // loop_pre_header
      _
    $region3: #{tpu_custom_call.1} parent=1 // loop_header
      %s35 = sphi 0, %s39
      %p36 = scmp.ge.s32.totalorder %s35, 4
      %s45 = sphi 0, %s47
      %s48 = sphi 0, %s45
      %s49 = sphi 0, %s48
      %s65 = sphi 0, %s49
      %s69 = sphi 0, %s69
      %s71 = sphi 0, %s69
      %s72 = sphi 0, %s71
      %s86 = sphi 0, %s72
      %s90 = sphi 0, %s90
      %s92 = sphi 0, %s90
      %s93 = sphi 0, %s92
      %s107 = sphi 0, %s93
      %s111 = sphi 0, %s111
      %s113 = sphi 0, %s111
      %s114 = sphi 0, %s113
      %s128 = sphi 0, %s114
      %s132 = sphi 0, %s132
      %s134 = sphi 0, %s132
      %s135 = sphi 0, %s134
      %s149 = sphi 0, %s135
      %s153 = sphi 0, %s153
      %s155 = sphi 0, %s153
      %s156 = sphi 0, %s155
      %s170 = sphi 0, %s156
      %s174 = sphi 0, %s174
      %s176 = sphi 0, %s174
      %s177 = sphi 0, %s176
      %s191 = sphi 0, %s177
      %s195 = sphi 0, %s195
      %s197 = sphi 0, %s195
      %s198 = sphi 0, %s197
      %s212 = sphi 0, %s198
      %s216 = sphi 0, %s216
      %s218 = sphi 0, %s216
      %s219 = sphi 0, %s218
      %s233 = sphi 0, %s219
      %s237 = sphi 0, %s237
      %s239 = sphi 0, %s237
      %s240 = sphi 0, %s239
      %s254 = sphi 0, %s240
      %s258 = sphi 0, %s258
      %s260 = sphi 0, %s258
      %s261 = sphi 0, %s260
      %s275 = sphi 0, %s261
      %s281 = sphi 0, %s283
      %s284 = sphi 0, %s281
      %s285 = sphi 0, %s284
      %s301 = sphi 0, %s285
      %s307 = sphi 0, %s309
      %s310 = sphi 0, %s307
      %s311 = sphi 0, %s310
      %s327 = sphi 0, %s311
      %s333 = sphi 0, %s335
      %s336 = sphi 0, %s333
      %s337 = sphi 0, %s336
      %s353 = sphi 0, %s337
    $region4: #{tpu_custom_call.1} parent=1 // loop_header_branch
      %38 = sbr.rel (%p36) target = $region8
    $region5: #{tpu_custom_call.1} parent=1 // loop_body
      %s40 = ssub.s32 %s35, 1
      %s41 = ssub.s32 %s35, 2
      %s42 = sadd.s32 %s35, 1
      %s43 = ssub.s32 %s35, %s42
      %p44 = scmp.eq.s32.totalorder %s43, 0
      %s46 = sadd.s32 %s45, 1
      %s47 = scalar_select %p44, %s45, %s46
      %p50 = pneg %p44
      %p51 = scmp.eq.s32.totalorder %s35, 1
      %p52 = por %p50, %p51
      %p53 = scmp.ne.s32.totalorder %s45, %s48
      %p54 = scmp.eq.s32.totalorder %s35, 0
      %p55 = por %p53, %p54
      %p56 = scmp.ne.s32.totalorder %s45, %s48
      %p57 = scmp.eq.s32.totalorder %s40, 1
      %p58 = por %p56, %p57
      %p59 = scmp.ne.s32.totalorder %s48, %s49
      %p60 = scmp.eq.s32.totalorder %s40, 0
      %p61 = por %p59, %p60
      %p62 = scmp.ne.s32.totalorder %s48, %s49
      %p63 = scmp.eq.s32.totalorder %s41, 1
      %p64 = por %p62, %p63
      %p66 = scmp.ne.s32.totalorder %s49, %s65
      %p67 = scmp.eq.s32.totalorder %s41, 0
      %p68 = por %p66, %p67
      %s70 = sadd.s32 %s69, 1
      %p73 = scmp.eq.s32.totalorder %s35, 1
      %p74 = scmp.ne.s32.totalorder %s69, %s71
      %p75 = scmp.eq.s32.totalorder %s35, 0
      %p76 = por %p74, %p75
      %p77 = scmp.ne.s32.totalorder %s69, %s71
      %p78 = scmp.eq.s32.totalorder %s40, 1
      %p79 = por %p77, %p78
      %p80 = scmp.ne.s32.totalorder %s71, %s72
      %p81 = scmp.eq.s32.totalorder %s40, 0
      %p82 = por %p80, %p81
      %p83 = scmp.ne.s32.totalorder %s71, %s72
      %p84 = scmp.eq.s32.totalorder %s41, 1
      %p85 = por %p83, %p84
      %p87 = scmp.ne.s32.totalorder %s72, %s86
      %p88 = scmp.eq.s32.totalorder %s41, 0
      %p89 = por %p87, %p88
      %s91 = sadd.s32 %s90, 1
      %p94 = scmp.eq.s32.totalorder %s35, 1
      %p95 = scmp.ne.s32.totalorder %s90, %s92
      %p96 = scmp.eq.s32.totalorder %s35, 0
      %p97 = por %p95, %p96
      %p98 = scmp.ne.s32.totalorder %s90, %s92
      %p99 = scmp.eq.s32.totalorder %s40, 1
      %p100 = por %p98, %p99
      %p101 = scmp.ne.s32.totalorder %s92, %s93
      %p102 = scmp.eq.s32.totalorder %s40, 0
      %p103 = por %p101, %p102
      %p104 = scmp.ne.s32.totalorder %s92, %s93
      %p105 = scmp.eq.s32.totalorder %s41, 1
      %p106 = por %p104, %p105
      %p108 = scmp.ne.s32.totalorder %s93, %s107
      %p109 = scmp.eq.s32.totalorder %s41, 0
      %p110 = por %p108, %p109
      %s112 = sadd.s32 %s111, 1
      %p115 = scmp.eq.s32.totalorder %s35, 1
      %p116 = scmp.ne.s32.totalorder %s111, %s113
      %p117 = scmp.eq.s32.totalorder %s35, 0
      %p118 = por %p116, %p117
      %p119 = scmp.ne.s32.totalorder %s111, %s113
      %p120 = scmp.eq.s32.totalorder %s40, 1
      %p121 = por %p119, %p120
      %p122 = scmp.ne.s32.totalorder %s113, %s114
      %p123 = scmp.eq.s32.totalorder %s40, 0
      %p124 = por %p122, %p123
      %p125 = scmp.ne.s32.totalorder %s113, %s114
      %p126 = scmp.eq.s32.totalorder %s41, 1
      %p127 = por %p125, %p126
      %p129 = scmp.ne.s32.totalorder %s114, %s128
      %p130 = scmp.eq.s32.totalorder %s41, 0
      %p131 = por %p129, %p130
      %s133 = sadd.s32 %s132, 1
      %p136 = scmp.eq.s32.totalorder %s35, 1
      %p137 = scmp.ne.s32.totalorder %s132, %s134
      %p138 = scmp.eq.s32.totalorder %s35, 0
      %p139 = por %p137, %p138
      %p140 = scmp.ne.s32.totalorder %s132, %s134
      %p141 = scmp.eq.s32.totalorder %s40, 1
      %p142 = por %p140, %p141
      %p143 = scmp.ne.s32.totalorder %s134, %s135
      %p144 = scmp.eq.s32.totalorder %s40, 0
      %p145 = por %p143, %p144
      %p146 = scmp.ne.s32.totalorder %s134, %s135
      %p147 = scmp.eq.s32.totalorder %s41, 1
      %p148 = por %p146, %p147
      %p150 = scmp.ne.s32.totalorder %s135, %s149
      %p151 = scmp.eq.s32.totalorder %s41, 0
      %p152 = por %p150, %p151
      %s154 = sadd.s32 %s153, 1
      %p157 = scmp.eq.s32.totalorder %s35, 1
      %p158 = scmp.ne.s32.totalorder %s153, %s155
      %p159 = scmp.eq.s32.totalorder %s35, 0
      %p160 = por %p158, %p159
      %p161 = scmp.ne.s32.totalorder %s153, %s155
      %p162 = scmp.eq.s32.totalorder %s40, 1
      %p163 = por %p161, %p162
      %p164 = scmp.ne.s32.totalorder %s155, %s156
      %p165 = scmp.eq.s32.totalorder %s40, 0
      %p166 = por %p164, %p165
      %p167 = scmp.ne.s32.totalorder %s155, %s156
      %p168 = scmp.eq.s32.totalorder %s41, 1
      %p169 = por %p167, %p168
      %p171 = scmp.ne.s32.totalorder %s156, %s170
      %p172 = scmp.eq.s32.totalorder %s41, 0
      %p173 = por %p171, %p172
      %s175 = sadd.s32 %s174, 1
      %p178 = scmp.eq.s32.totalorder %s35, 1
      %p179 = scmp.ne.s32.totalorder %s174, %s176
      %p180 = scmp.eq.s32.totalorder %s35, 0
      %p181 = por %p179, %p180
      %p182 = scmp.ne.s32.totalorder %s174, %s176
      %p183 = scmp.eq.s32.totalorder %s40, 1
      %p184 = por %p182, %p183
      %p185 = scmp.ne.s32.totalorder %s176, %s177
      %p186 = scmp.eq.s32.totalorder %s40, 0
      %p187 = por %p185, %p186
      %p188 = scmp.ne.s32.totalorder %s176, %s177
      %p189 = scmp.eq.s32.totalorder %s41, 1
      %p190 = por %p188, %p189
      %p192 = scmp.ne.s32.totalorder %s177, %s191
      %p193 = scmp.eq.s32.totalorder %s41, 0
      %p194 = por %p192, %p193
      %s196 = sadd.s32 %s195, 1
      %p199 = scmp.eq.s32.totalorder %s35, 1
      %p200 = scmp.ne.s32.totalorder %s195, %s197
      %p201 = scmp.eq.s32.totalorder %s35, 0
      %p202 = por %p200, %p201
      %p203 = scmp.ne.s32.totalorder %s195, %s197
      %p204 = scmp.eq.s32.totalorder %s40, 1
      %p205 = por %p203, %p204
      %p206 = scmp.ne.s32.totalorder %s197, %s198
      %p207 = scmp.eq.s32.totalorder %s40, 0
      %p208 = por %p206, %p207
      %p209 = scmp.ne.s32.totalorder %s197, %s198
      %p210 = scmp.eq.s32.totalorder %s41, 1
      %p211 = por %p209, %p210
      %p213 = scmp.ne.s32.totalorder %s198, %s212
      %p214 = scmp.eq.s32.totalorder %s41, 0
      %p215 = por %p213, %p214
      %s217 = sadd.s32 %s216, 1
      %p220 = scmp.eq.s32.totalorder %s35, 1
      %p221 = scmp.ne.s32.totalorder %s216, %s218
      %p222 = scmp.eq.s32.totalorder %s35, 0
      %p223 = por %p221, %p222
      %p224 = scmp.ne.s32.totalorder %s216, %s218
      %p225 = scmp.eq.s32.totalorder %s40, 1
      %p226 = por %p224, %p225
      %p227 = scmp.ne.s32.totalorder %s218, %s219
      %p228 = scmp.eq.s32.totalorder %s40, 0
      %p229 = por %p227, %p228
      %p230 = scmp.ne.s32.totalorder %s218, %s219
      %p231 = scmp.eq.s32.totalorder %s41, 1
      %p232 = por %p230, %p231
      %p234 = scmp.ne.s32.totalorder %s219, %s233
      %p235 = scmp.eq.s32.totalorder %s41, 0
      %p236 = por %p234, %p235
      %s238 = sadd.s32 %s237, 1
      %p241 = scmp.eq.s32.totalorder %s35, 1
      %p242 = scmp.ne.s32.totalorder %s237, %s239
      %p243 = scmp.eq.s32.totalorder %s35, 0
      %p244 = por %p242, %p243
      %p245 = scmp.ne.s32.totalorder %s237, %s239
      %p246 = scmp.eq.s32.totalorder %s40, 1
      %p247 = por %p245, %p246
      %p248 = scmp.ne.s32.totalorder %s239, %s240
      %p249 = scmp.eq.s32.totalorder %s40, 0
      %p250 = por %p248, %p249
      %p251 = scmp.ne.s32.totalorder %s239, %s240
      %p252 = scmp.eq.s32.totalorder %s41, 1
      %p253 = por %p251, %p252
      %p255 = scmp.ne.s32.totalorder %s240, %s254
      %p256 = scmp.eq.s32.totalorder %s41, 0
      %p257 = por %p255, %p256
      %s259 = sadd.s32 %s258, 1
      %p262 = scmp.eq.s32.totalorder %s35, 1
      %p263 = scmp.ne.s32.totalorder %s258, %s260
      %p264 = scmp.eq.s32.totalorder %s35, 0
      %p265 = por %p263, %p264
      %p266 = scmp.ne.s32.totalorder %s258, %s260
      %p267 = scmp.eq.s32.totalorder %s40, 1
      %p268 = por %p266, %p267
      %p269 = scmp.ne.s32.totalorder %s260, %s261
      %p270 = scmp.eq.s32.totalorder %s40, 0
      %p271 = por %p269, %p270
      %p272 = scmp.ne.s32.totalorder %s260, %s261
      %p273 = scmp.eq.s32.totalorder %s41, 1
      %p274 = por %p272, %p273
      %p276 = scmp.ne.s32.totalorder %s261, %s275
      %p277 = scmp.eq.s32.totalorder %s41, 0
      %p278 = por %p276, %p277
      %s279 = ssub.s32 %s35, %s42
      %p280 = scmp.eq.s32.totalorder %s279, 0
      %s282 = sadd.s32 %s281, 1
      %s283 = scalar_select %p280, %s281, %s282
      %p286 = pneg %p280
      %p287 = scmp.eq.s32.totalorder %s35, 1
      %p288 = por %p286, %p287
      %p289 = scmp.ne.s32.totalorder %s281, %s284
      %p290 = scmp.eq.s32.totalorder %s35, 0
      %p291 = por %p289, %p290
      %p292 = scmp.ne.s32.totalorder %s281, %s284
      %p293 = scmp.eq.s32.totalorder %s40, 1
      %p294 = por %p292, %p293
      %p295 = scmp.ne.s32.totalorder %s284, %s285
      %p296 = scmp.eq.s32.totalorder %s40, 0
      %p297 = por %p295, %p296
      %p298 = scmp.ne.s32.totalorder %s284, %s285
      %p299 = scmp.eq.s32.totalorder %s41, 1
      %p300 = por %p298, %p299
      %p302 = scmp.ne.s32.totalorder %s285, %s301
      %p303 = scmp.eq.s32.totalorder %s41, 0
      %p304 = por %p302, %p303
      %s305 = ssub.s32 %s35, %s42
      %p306 = scmp.eq.s32.totalorder %s305, 0
      %s308 = sadd.s32 %s307, 1
      %s309 = scalar_select %p306, %s307, %s308
      %p312 = pneg %p306
      %p313 = scmp.eq.s32.totalorder %s35, 1
      %p314 = por %p312, %p313
      %p315 = scmp.ne.s32.totalorder %s307, %s310
      %p316 = scmp.eq.s32.totalorder %s35, 0
      %p317 = por %p315, %p316
      %p318 = scmp.ne.s32.totalorder %s307, %s310
      %p319 = scmp.eq.s32.totalorder %s40, 1
      %p320 = por %p318, %p319
      %p321 = scmp.ne.s32.totalorder %s310, %s311
      %p322 = scmp.eq.s32.totalorder %s40, 0
      %p323 = por %p321, %p322
      %p324 = scmp.ne.s32.totalorder %s310, %s311
      %p325 = scmp.eq.s32.totalorder %s41, 1
      %p326 = por %p324, %p325
      %p328 = scmp.ne.s32.totalorder %s311, %s327
      %p329 = scmp.eq.s32.totalorder %s41, 0
      %p330 = por %p328, %p329
      %s331 = ssub.s32 %s35, %s42
      %p332 = scmp.eq.s32.totalorder %s331, 0
      %s334 = sadd.s32 %s333, 1
      %s335 = scalar_select %p332, %s333, %s334
      %p338 = pneg %p332
      %p339 = scmp.eq.s32.totalorder %s35, 1
      %p340 = por %p338, %p339
      %p341 = scmp.ne.s32.totalorder %s333, %s336
      %p342 = scmp.eq.s32.totalorder %s35, 0
      %p343 = por %p341, %p342
      %p344 = scmp.ne.s32.totalorder %s333, %s336
      %p345 = scmp.eq.s32.totalorder %s40, 1
      %p346 = por %p344, %p345
      %p347 = scmp.ne.s32.totalorder %s336, %s337
      %p348 = scmp.eq.s32.totalorder %s40, 0
      %p349 = por %p347, %p348
      %p350 = scmp.ne.s32.totalorder %s336, %s337
      %p351 = scmp.eq.s32.totalorder %s41, 1
      %p352 = por %p350, %p351
      %p354 = scmp.ne.s32.totalorder %s337, %s353
      %p355 = scmp.eq.s32.totalorder %s41, 0
      %p356 = por %p354, %p355
      %p357 = scmp.le.s32.totalorder 1, %s35
      %p358 = scmp.lt.s32.totalorder %s35, 3
      %p359 = pnand %p357, %p358
      %p360 = pneg %p359
      // Predicated region
      $region9: #{tpu_custom_call.1} parent=5 // pred_check
        _
      $region10: #{tpu_custom_call.1} parent=5 // pred_check_branch
        %362 = sbr.rel (%p359) target = $region12
      $region11: #{tpu_custom_call.1} parent=5 // pred_region
        %s363 = ssub.s32 %s35, 1
        // Predicated region
        $region13: #{tpu_custom_call.1} parent=11 // pred_check
          %p364 = pneg %p82
        $region14: #{tpu_custom_call.1} parent=11 // pred_check_branch
          %366 = sbr.rel (%p364) target = $region16
        $region15: #{tpu_custom_call.1} parent=11 // pred_region
          %s368 = ssub.s32 256, 256
          %369 = vsyncadd [#allocation10], %s368
          %s370 = sshll.u32 [#allocation9], 4
          %s371 = int_to_ptr.vmem [resolvable:$true] %s370
          %376 = dma.hbm_to_vmem [thread:$0]  %s1, 256, %s371, [#allocation10], 128, 128, 8
        $region16: #{tpu_custom_call.1} parent=11 // pred_fallthru
          _
        // Predicated region
        $region17: #{tpu_custom_call.1} parent=11 // pred_check
          %p377 = pneg %p103
        $region18: #{tpu_custom_call.1} parent=11 // pred_check_branch
          %379 = sbr.rel (%p377) target = $region20
        $region19: #{tpu_custom_call.1} parent=11 // pred_region
          _
        $region20: #{tpu_custom_call.1} parent=11 // pred_fallthru
          _
        // Predicated region
        $region21: #{tpu_custom_call.1} parent=11 // pred_check
          %p380 = pneg %p124
        $region22: #{tpu_custom_call.1} parent=11 // pred_check_branch
          %382 = sbr.rel (%p380) target = $region24
        $region23: #{tpu_custom_call.1} parent=11 // pred_region
          %s384 = ssub.s32 512, 512
          %385 = vsyncadd [#allocation10], %s384
          %s386 = sshll.u32 [#allocation11], 4
          %s387 = int_to_ptr.vmem [resolvable:$true] %s386
          %392 = dma.hbm_to_vmem [thread:$0]  %s3, 512, %s387, [#allocation10], 128, 128, 8
        $region24: #{tpu_custom_call.1} parent=11 // pred_fallthru
          _
        // Predicated region
        $region25: #{tpu_custom_call.1} parent=11 // pred_check
          %p393 = pneg %p145
        $region26: #{tpu_custom_call.1} parent=11 // pred_check_branch
          %395 = sbr.rel (%p393) target = $region28
        $region27: #{tpu_custom_call.1} parent=11 // pred_region
          _
        $region28: #{tpu_custom_call.1} parent=11 // pred_fallthru
          _
        // Predicated region
        $region29: #{tpu_custom_call.1} parent=11 // pred_check
          %p396 = pneg %p166
        $region30: #{tpu_custom_call.1} parent=11 // pred_check_branch
          %398 = sbr.rel (%p396) target = $region32
        $region31: #{tpu_custom_call.1} parent=11 // pred_region
          %s400 = ssub.s32 16, 16
          %401 = vsyncadd [#allocation13], %s400
          %s403 = sshll.u32 [#allocation12], 4
          %s404 = int_to_ptr.vmem [resolvable:$true] %s403
          %406 = dma.hbm_to_vmem [thread:$0]  %s5, 16, %s404, [#allocation13]
        $region32: #{tpu_custom_call.1} parent=11 // pred_fallthru
          _
        // Predicated region
        $region33: #{tpu_custom_call.1} parent=11 // pred_check
          %p407 = pneg %p187
        $region34: #{tpu_custom_call.1} parent=11 // pred_check_branch
          %409 = sbr.rel (%p407) target = $region36
        $region35: #{tpu_custom_call.1} parent=11 // pred_region
          _
        $region36: #{tpu_custom_call.1} parent=11 // pred_fallthru
          _
        // Predicated region
        $region37: #{tpu_custom_call.1} parent=11 // pred_check
          %p410 = pneg %p208
        $region38: #{tpu_custom_call.1} parent=11 // pred_check_branch
          %412 = sbr.rel (%p410) target = $region40
        $region39: #{tpu_custom_call.1} parent=11 // pred_region
          %s414 = ssub.s32 16, 16
          %415 = vsyncadd [#allocation13], %s414
          %s417 = sshll.u32 [#allocation14], 4
          %s418 = int_to_ptr.vmem [resolvable:$true] %s417
          %420 = dma.hbm_to_vmem [thread:$0]  %s7, 16, %s418, [#allocation13]
        $region40: #{tpu_custom_call.1} parent=11 // pred_fallthru
          _
        // Predicated region
        $region41: #{tpu_custom_call.1} parent=11 // pred_check
          %p421 = pneg %p229
        $region42: #{tpu_custom_call.1} parent=11 // pred_check_branch
          %423 = sbr.rel (%p421) target = $region44
        $region43: #{tpu_custom_call.1} parent=11 // pred_region
          _
        $region44: #{tpu_custom_call.1} parent=11 // pred_fallthru
          _
        // Predicated region
        $region45: #{tpu_custom_call.1} parent=11 // pred_check
          %p424 = pneg %p250
        $region46: #{tpu_custom_call.1} parent=11 // pred_check_branch
          %426 = sbr.rel (%p424) target = $region48
        $region47: #{tpu_custom_call.1} parent=11 // pred_region
          _
        $region48: #{tpu_custom_call.1} parent=11 // pred_fallthru
          _
        // Predicated region
        $region49: #{tpu_custom_call.1} parent=11 // pred_check
          %p427 = pneg %p271
        $region50: #{tpu_custom_call.1} parent=11 // pred_check_branch
          %429 = sbr.rel (%p427) target = $region52
        $region51: #{tpu_custom_call.1} parent=11 // pred_region
          _
        $region52: #{tpu_custom_call.1} parent=11 // pred_fallthru
          _
      $region12: #{tpu_custom_call.1} parent=5 // pred_fallthru
        _
      %p430 = scmp.lt.s32.totalorder %s35, 2
      // Predicated region
      $region53: #{tpu_custom_call.1} parent=5 // pred_check
        %p431 = pneg %p430
      $region54: #{tpu_custom_call.1} parent=5 // pred_check_branch
        %433 = sbr.rel (%p431) target = $region56
      $region55: #{tpu_custom_call.1} parent=5 // pred_region
        // Predicated region
        $region57: #{tpu_custom_call.1} parent=55 // pred_check
          %p434 = pneg %p55
        $region58: #{tpu_custom_call.1} parent=55 // pred_check_branch
          %436 = sbr.rel (%p434) target = $region60
        $region59: #{tpu_custom_call.1} parent=55 // pred_region
          %s437 = sand.u32 %s45, 1
          %s438 = scalar_lea.sflag [#allocation7], %s437
          %s439 = sand.u32 %s45, 1
          %s440 = smul.addr %s439, 32
          %s441 = scalar_lea.vmem [#allocation6], %s440
          %s442 = smul.u32 2, %s35
          %s444 = ssub.s32 512, 512
          %445 = vsyncadd %s438, %s444
          %s446 = smul.addr %s442, 2
          %s447 = smul.addr %s446, 128
          %s448 = scalar_lea.hbm %s0, %s447
          %s449 = sshll.u32 %s441, 4
          %s450 = int_to_ptr.vmem [resolvable:$true] %s449
          %455 = dma.hbm_to_vmem [thread:$0]  %s448, 512, %s450, %s438, 128, 128, 8
        $region60: #{tpu_custom_call.1} parent=55 // pred_fallthru
          _
      $region56: #{tpu_custom_call.1} parent=5 // pred_fallthru
        _
      %p456 = scmp.le.s32.totalorder 1, %s35
      %p457 = scmp.lt.s32.totalorder %s35, 3
      %p458 = pnand %p456, %p457
      %p459 = pneg %p458
      // Predicated region
      $region61: #{tpu_custom_call.1} parent=5 // pred_check
        _
      $region62: #{tpu_custom_call.1} parent=5 // pred_check_branch
        %461 = sbr.rel (%p458) target = $region64
      $region63: #{tpu_custom_call.1} parent=5 // pred_region
        %s462 = ssub.s32 %s35, 1
        %s463 = sand.u32 %s48, 1
        %s464 = scalar_lea.sflag [#allocation7], %s463
        %s465 = sand.u32 %s48, 1
        %s466 = smul.addr %s465, 32
        %s467 = scalar_lea.vmem [#allocation6], %s466
        // Predicated region
        $region65: #{tpu_custom_call.1} parent=63 // pred_check
          %p468 = pneg %p61
        $region66: #{tpu_custom_call.1} parent=63 // pred_check_branch
          %470 = sbr.rel (%p468) target = $region68
        $region67: #{tpu_custom_call.1} parent=63 // pred_region
          %471 = dma.done %s464, 512
        $region68: #{tpu_custom_call.1} parent=63 // pred_fallthru
          _
        // Predicated region
        $region69: #{tpu_custom_call.1} parent=63 // pred_check
          %p472 = pneg %p82
        $region70: #{tpu_custom_call.1} parent=63 // pred_check_branch
          %474 = sbr.rel (%p472) target = $region72
        $region71: #{tpu_custom_call.1} parent=63 // pred_region
          %475 = dma.done [#allocation10], 256
        $region72: #{tpu_custom_call.1} parent=63 // pred_fallthru
          _
        // Predicated region
        $region73: #{tpu_custom_call.1} parent=63 // pred_check
          %p476 = pneg %p124
        $region74: #{tpu_custom_call.1} parent=63 // pred_check_branch
          %478 = sbr.rel (%p476) target = $region76
        $region75: #{tpu_custom_call.1} parent=63 // pred_region
          %479 = dma.done [#allocation10], 512
        $region76: #{tpu_custom_call.1} parent=63 // pred_fallthru
          _
        // Predicated region
        $region77: #{tpu_custom_call.1} parent=63 // pred_check
          %p480 = pneg %p166
        $region78: #{tpu_custom_call.1} parent=63 // pred_check_branch
          %482 = sbr.rel (%p480) target = $region80
        $region79: #{tpu_custom_call.1} parent=63 // pred_region
          %483 = dma.done [#allocation13], 16
        $region80: #{tpu_custom_call.1} parent=63 // pred_fallthru
          _
        // Predicated region
        $region81: #{tpu_custom_call.1} parent=63 // pred_check
          %p484 = pneg %p208
        $region82: #{tpu_custom_call.1} parent=63 // pred_check_branch
          %486 = sbr.rel (%p484) target = $region84
        $region83: #{tpu_custom_call.1} parent=63 // pred_region
          %487 = dma.done [#allocation13], 16
        $region84: #{tpu_custom_call.1} parent=63 // pred_fallthru
          _
        %s488 = sand.u32 %s48, 1
        %s489 = scalar_lea.sflag [#allocation7], %s488
        %s490 = sand.u32 %s48, 1
        %s491 = smul.addr %s490, 32
        %s492 = scalar_lea.vmem [#allocation6], %s491
        %p493 = pneg %p61
        %p494 = pneg %p58
        %p495 = pneg %p82
        %p496 = pneg %p79
        %p497 = pneg %p103
        %p498 = pneg %p100
        %p499 = pneg %p124
        %p500 = pneg %p121
        %p501 = pneg %p145
        %p502 = pneg %p142
        %p503 = pneg %p166
        %p504 = pneg %p163
        %p505 = pneg %p187
        %p506 = pneg %p184
        %p507 = pneg %p208
        %p508 = pneg %p205
        %p509 = pneg %p229
        %p510 = pneg %p226
        %p511 = pneg %p250
        %p512 = pneg %p247
        %p513 = pneg %p271
        %p514 = pneg %p268
        %p515 = pneg %p297
        %p516 = pneg %p294
        %s517 = sand.u32 %s284, 1
        %s518 = scalar_lea.sflag [#allocation8], %s517
        %s519 = sand.u32 %s284, 1
        %s520 = scalar_lea.vmem [#allocation15], %s519
        %p521 = pneg %p323
        %p522 = pneg %p320
        %s523 = sand.u32 %s40, 1
        %s524 = scalar_lea.sflag [#allocation17], %s523
        %s525 = sand.u32 %s310, 1
        %s526 = smul.addr %s525, 2
        %s527 = scalar_lea.vmem [#allocation16], %s526
        %p528 = pneg %p349
        %p529 = pneg %p346
        %s530 = sand.u32 %s40, 1
        %s531 = scalar_lea.sflag [#allocation17], %s530
        %s532 = sand.u32 %s336, 1
        %s533 = smul.addr %s532, 2
        %s534 = scalar_lea.vmem [#allocation18], %s533
        %s535 = smul.u32 2, %s40
        %v536 = vld [vmem:[%s467] sm:$0xff]
        %v537 = vld [vmem:[%s467 + $0x8] sm:$0xff]
        %v538 = vld [vmem:[%s467 + $0x10] sm:$0xff]
        %v539 = vld [vmem:[%s467 + $0x18] sm:$0xff]
        %v540 = vld [vmem:[#allocation9] sm:$0xff]
        %v541 = vld [vmem:[#allocation9 + $0x8] sm:$0xff]
        %v542 = vld [vmem:[%s2] sm:$0x1]
        %v544 = vlaneseq
        %v545 = vshrl.u32 %v544, 7
        %v546 = vsub.s32 0, %v545
        %v547 = vrot.slane %v542, %v546
        %vm549 = vcmask 130048
        %v551 = vsel %vm549, %v536, 0
        %v554 = vsel %vm549, %v537, 0
        %v557 = vsel %vm549, %v538, 0
        %v560 = vsel %vm549, %v539, 0
        %562 = vmatprep.subr.mxu0 0.0
        %563 = vmatpush1.msra.mxu0 %v540
        %564 = vmatprep.subr.mxu0 0.0
        %565 = vmatpush1.msra.mxu0 %v541
        %566 = vmatprep.subr.mxu0 0.0
        %567 = vmatpush1.msra.mxu0 0.0
        %568 = vmatprep.subr.mxu0 0.0
        %569 = vmatpush1.msra.mxu0 0.0
        %570 = vmatprep.subr.mxu0 0.0
        %571 = vmatpush1.msra.mxu0 0.0
        %572 = vmatprep.subr.mxu0 0.0
        %573 = vmatpush1.msra.mxu0 0.0
        %574 = vmatprep.subr.mxu0 0.0
        %575 = vmatpush1.msra.mxu0 0.0
        %576 = vmatprep.subr.mxu0 0.0
        %577 = vmatpush1.msra.mxu0 0.0
        %578 = vmatprep.subr.mxu0 0.0
        %579 = vmatpush1.msra.mxu0 0.0
        %580 = vmatprep.subr.mxu0 0.0
        %581 = vmatpush1.msra.mxu0 0.0
        %582 = vmatprep.subr.mxu0 0.0
        %583 = vmatpush1.msra.mxu0 0.0
        %584 = vmatprep.subr.mxu0 0.0
        %585 = vmatpush1.msra.mxu0 0.0
        %586 = vmatprep.subr.mxu0 0.0
        %587 = vmatpush1.msra.mxu0 0.0
        %588 = vmatprep.subr.mxu0 0.0
        %589 = vmatpush1.msra.mxu0 0.0
        %590 = vmatprep.subr.mxu0 0.0
        %591 = vmatpush1.msra.mxu0 0.0
        %592 = vmatprep.subr.mxu0 0.0
        %593 = vmatpush1.msra.mxu0 0.0
        %594 = vmatprep.subr.mxu0 0.0
        %595 = vmatpush1.msra.mxu0 0.0
        %596 = vmatprep.subr.mxu0 0.0
        %597 = vmatpush1.msra.mxu0 0.0
        %598 = vmatprep.subr.mxu0 0.0
        %599 = vmatpush1.msra.mxu0 0.0
        %600 = vmatprep.subr.mxu0 0.0
        %601 = vmatpush1.msra.mxu0 0.0
        %602 = vmatprep.subr.mxu0 0.0
        %603 = vmatpush1.msra.mxu0 0.0
        %604 = vmatprep.subr.mxu0 0.0
        %605 = vmatpush1.msra.mxu0 0.0
        %606 = vmatprep.subr.mxu0 0.0
        %607 = vmatpush1.msra.mxu0 0.0
        %608 = vmatprep.subr.mxu0 0.0
        %609 = vmatpush1.msra.mxu0 0.0
        %610 = vmatprep.subr.mxu0 0.0
        %611 = vmatpush1.msra.mxu0 0.0
        %612 = vmatprep.subr.mxu0 0.0
        %613 = vmatpush1.msra.mxu0 0.0
        %614 = vmatprep.subr.mxu0 0.0
        %615 = vmatpush1.msra.mxu0 0.0
        %616 = vmatprep.subr.mxu0 0.0
        %617 = vmatpush1.msra.mxu0 0.0
        %618 = vmatprep.subr.mxu0 0.0
        %619 = vmatpush1.msra.mxu0 0.0
        %620 = vmatprep.subr.mxu0 0.0
        %621 = vmatpush1.msra.mxu0 0.0
        %622 = vmatprep.subr.mxu0 0.0
        %623 = vmatpush1.msra.mxu0 0.0
        %624 = vmatprep.subr.mxu0 0.0
        %625 = vmatpush1.msra.mxu0 0.0
        %626 = vmatprep.mubr.f32.mxu0 0.0
        %627 = vmatmul.mubr.f32.gmra.mrb[0].mxu0 %v551
        %v628 = vpop.f32.mrb[0].mxu0
        %v629 = vadd.f32 %v547, %v628
        %v630 = vpop.f32.mrb[0].mxu0
        %631 = vmatprep.mubr.f32.mxu0 0.0
        %632 = vmatmul.mubr.f32.gmra.mrb[0].mxu0 %v554
        %v633 = vpop.f32.mrb[0].mxu0
        %v634 = vadd.f32 %v547, %v633
        %v635 = vpop.f32.mrb[0].mxu0
        %636 = vmatprep.mubr.f32.mxu0 0.0
        %637 = vmatmul.mubr.f32.gmra.mrb[0].mxu0 %v557
        %v638 = vpop.f32.mrb[0].mxu0
        %v639 = vadd.f32 %v547, %v638
        %v640 = vpop.f32.mrb[0].mxu0
        %641 = vmatprep.mubr.f32.mxu0 0.0
        %642 = vmatmul.mubr.f32.gmra.mrb[0].mxu0 %v560
        %v643 = vpop.f32.mrb[0].mxu0
        %v644 = vadd.f32 %v547, %v643
        %v645 = vpop.f32.mrb[0].mxu0
        %646 = vdwg.mxu0
        %v647 = vmax.f32 %v629, 0.0
        %v648 = vmax.f32 %v634, 0.0
        %v649 = vmax.f32 %v639, 0.0
        %v650 = vmax.f32 %v644, 0.0
        %v651 = vld [vmem:[#allocation11] sm:$0xff]
        %v652 = vld [vmem:[#allocation11 + $0x8] sm:$0xff]
        %v653 = vld [vmem:[#allocation11 + $0x10] sm:$0xff]
        %v654 = vld [vmem:[#allocation11 + $0x18] sm:$0xff]
        %vm655 = vcmask 261120
        %v657 = vsel %vm655, %v647, 0
        %v660 = vsel %vm655, %v648, 0
        %v663 = vsel %vm655, %v649, 0
        %v666 = vsel %vm655, %v650, 0
        %668 = vmatprep.subr.mxu0 0.0
        %669 = vmatpush1.msra.mxu0 %v651
        %670 = vmatprep.subr.mxu0 0.0
        %671 = vmatpush1.msra.mxu0 %v652
        %672 = vmatprep.subr.mxu0 0.0
        %673 = vmatpush1.msra.mxu0 %v653
        %674 = vmatprep.subr.mxu0 0.0
        %675 = vmatpush1.msra.mxu0 %v654
        %676 = vmatprep.subr.mxu0 0.0
        %677 = vmatpush1.msra.mxu0 0.0
        %678 = vmatprep.subr.mxu0 0.0
        %679 = vmatpush1.msra.mxu0 0.0
        %680 = vmatprep.subr.mxu0 0.0
        %681 = vmatpush1.msra.mxu0 0.0
        %682 = vmatprep.subr.mxu0 0.0
        %683 = vmatpush1.msra.mxu0 0.0
        %684 = vmatprep.subr.mxu0 0.0
        %685 = vmatpush1.msra.mxu0 0.0
        %686 = vmatprep.subr.mxu0 0.0
        %687 = vmatpush1.msra.mxu0 0.0
        %688 = vmatprep.subr.mxu0 0.0
        %689 = vmatpush1.msra.mxu0 0.0
        %690 = vmatprep.subr.mxu0 0.0
        %691 = vmatpush1.msra.mxu0 0.0
        %692 = vmatprep.subr.mxu0 0.0
        %693 = vmatpush1.msra.mxu0 0.0
        %694 = vmatprep.subr.mxu0 0.0
        %695 = vmatpush1.msra.mxu0 0.0
        %696 = vmatprep.subr.mxu0 0.0
        %697 = vmatpush1.msra.mxu0 0.0
        %698 = vmatprep.subr.mxu0 0.0
        %699 = vmatpush1.msra.mxu0 0.0
        %700 = vmatprep.subr.mxu0 0.0
        %701 = vmatpush1.msra.mxu0 0.0
        %702 = vmatprep.subr.mxu0 0.0
        %703 = vmatpush1.msra.mxu0 0.0
        %704 = vmatprep.subr.mxu0 0.0
        %705 = vmatpush1.msra.mxu0 0.0
        %706 = vmatprep.subr.mxu0 0.0
        %707 = vmatpush1.msra.mxu0 0.0
        %708 = vmatprep.subr.mxu0 0.0
        %709 = vmatpush1.msra.mxu0 0.0
        %710 = vmatprep.subr.mxu0 0.0
        %711 = vmatpush1.msra.mxu0 0.0
        %712 = vmatprep.subr.mxu0 0.0
        %713 = vmatpush1.msra.mxu0 0.0
        %714 = vmatprep.subr.mxu0 0.0
        %715 = vmatpush1.msra.mxu0 0.0
        %716 = vmatprep.subr.mxu0 0.0
        %717 = vmatpush1.msra.mxu0 0.0
        %718 = vmatprep.subr.mxu0 0.0
        %719 = vmatpush1.msra.mxu0 0.0
        %720 = vmatprep.subr.mxu0 0.0
        %721 = vmatpush1.msra.mxu0 0.0
        %722 = vmatprep.subr.mxu0 0.0
        %723 = vmatpush1.msra.mxu0 0.0
        %724 = vmatprep.subr.mxu0 0.0
        %725 = vmatpush1.msra.mxu0 0.0
        %726 = vmatprep.subr.mxu0 0.0
        %727 = vmatpush1.msra.mxu0 0.0
        %728 = vmatprep.subr.mxu0 0.0
        %729 = vmatpush1.msra.mxu0 0.0
        %730 = vmatprep.subr.mxu0 0.0
        %731 = vmatpush1.msra.mxu0 0.0
        %732 = vmatprep.mubr.f32.mxu0 0.0
        %733 = vmatmul.mubr.f32.gmra.mrb[0].mxu0 %v657
        %v734 = vpop.f32.mrb[0].mxu0
        %v735 = vadd.f32 0.0, %v734
        %v736 = vpop.f32.mrb[0].mxu0
        %737 = vmatprep.mubr.f32.mxu0 0.0
        %738 = vmatmul.mubr.f32.gmra.mrb[0].mxu0 %v660
        %v739 = vpop.f32.mrb[0].mxu0
        %v740 = vadd.f32 0.0, %v739
        %v741 = vpop.f32.mrb[0].mxu0
        %742 = vmatprep.mubr.f32.mxu0 0.0
        %743 = vmatmul.mubr.f32.gmra.mrb[0].mxu0 %v663
        %v744 = vpop.f32.mrb[0].mxu0
        %v745 = vadd.f32 0.0, %v744
        %v746 = vpop.f32.mrb[0].mxu0
        %747 = vmatprep.mubr.f32.mxu0 0.0
        %748 = vmatmul.mubr.f32.gmra.mrb[0].mxu0 %v666
        %v749 = vpop.f32.mrb[0].mxu0
        %v750 = vadd.f32 0.0, %v749
        %v751 = vpop.f32.mrb[0].mxu0
        %752 = vdwg.mxu0
        %v753 = vld [vmem:[%s467] sm:$0xff]
        %v754 = vld [vmem:[%s467 + $0x8] sm:$0xff]
        %v755 = vld [vmem:[%s4] sm:$0x1]
        %v757 = vlaneseq
        %v758 = vshrl.u32 %v757, 7
        %v759 = vsub.s32 0, %v758
        %v760 = vrot.slane %v755, %v759
        %v763 = vsel %vm549, %v753, 0
        %v766 = vsel %vm549, %v754, 0
        %768 = vmatprep.subr.mxu0 0.0
        %769 = vmatpush1.msra.mxu0 %v735
        %770 = vmatprep.subr.mxu0 0.0
        %771 = vmatpush1.msra.mxu0 %v740
        %772 = vmatprep.subr.mxu0 0.0
        %773 = vmatpush1.msra.mxu0 0.0
        %774 = vmatprep.subr.mxu0 0.0
        %775 = vmatpush1.msra.mxu0 0.0
        %776 = vmatprep.subr.mxu0 0.0
        %777 = vmatpush1.msra.mxu0 0.0
        %778 = vmatprep.subr.mxu0 0.0
        %779 = vmatpush1.msra.mxu0 0.0
        %780 = vmatprep.subr.mxu0 0.0
        %781 = vmatpush1.msra.mxu0 0.0
        %782 = vmatprep.subr.mxu0 0.0
        %783 = vmatpush1.msra.mxu0 0.0
        %784 = vmatprep.subr.mxu0 0.0
        %785 = vmatpush1.msra.mxu0 0.0
        %786 = vmatprep.subr.mxu0 0.0
        %787 = vmatpush1.msra.mxu0 0.0
        %788 = vmatprep.subr.mxu0 0.0
        %789 = vmatpush1.msra.mxu0 0.0
        %790 = vmatprep.subr.mxu0 0.0
        %791 = vmatpush1.msra.mxu0 0.0
        %792 = vmatprep.subr.mxu0 0.0
        %793 = vmatpush1.msra.mxu0 0.0
        %794 = vmatprep.subr.mxu0 0.0
        %795 = vmatpush1.msra.mxu0 0.0
        %796 = vmatprep.subr.mxu0 0.0
        %797 = vmatpush1.msra.mxu0 0.0
        %798 = vmatprep.subr.mxu0 0.0
        %799 = vmatpush1.msra.mxu0 0.0
        %800 = vmatprep.subr.mxu0 0.0
        %801 = vmatpush1.msra.mxu0 0.0
        %802 = vmatprep.subr.mxu0 0.0
        %803 = vmatpush1.msra.mxu0 0.0
        %804 = vmatprep.subr.mxu0 0.0
        %805 = vmatpush1.msra.mxu0 0.0
        %806 = vmatprep.subr.mxu0 0.0
        %807 = vmatpush1.msra.mxu0 0.0
        %808 = vmatprep.subr.mxu0 0.0
        %809 = vmatpush1.msra.mxu0 0.0
        %810 = vmatprep.subr.mxu0 0.0
        %811 = vmatpush1.msra.mxu0 0.0
        %812 = vmatprep.subr.mxu0 0.0
        %813 = vmatpush1.msra.mxu0 0.0
        %814 = vmatprep.subr.mxu0 0.0
        %815 = vmatpush1.msra.mxu0 0.0
        %816 = vmatprep.subr.mxu0 0.0
        %817 = vmatpush1.msra.mxu0 0.0
        %818 = vmatprep.subr.mxu0 0.0
        %819 = vmatpush1.msra.mxu0 0.0
        %820 = vmatprep.subr.mxu0 0.0
        %821 = vmatpush1.msra.mxu0 0.0
        %822 = vmatprep.subr.mxu0 0.0
        %823 = vmatpush1.msra.mxu0 0.0
        %824 = vmatprep.subr.mxu0 0.0
        %825 = vmatpush1.msra.mxu0 0.0
        %826 = vmatprep.subr.mxu0 0.0
        %827 = vmatpush1.msra.mxu0 0.0
        %828 = vmatprep.subr.mxu0 0.0
        %829 = vmatpush1.msra.mxu0 0.0
        %830 = vmatprep.subr.mxu0 0.0
        %831 = vmatpush1.msra.mxu0 0.0
        %832 = vmatprep.mubr.f32.mxu0 0.0
        %833 = vmatmul.mubr.f32.gmra.mrb[0].mxu0 %v763
        %v834 = vpop.f32.mrb[0].mxu0
        %v835 = vadd.f32 %v760, %v834
        %v836 = vpop.f32.mrb[0].mxu0
        %837 = vmatprep.mubr.f32.mxu0 0.0
        %838 = vmatmul.mubr.f32.gmra.mrb[0].mxu0 %v766
        %v839 = vpop.f32.mrb[0].mxu0
        %v840 = vadd.f32 %v760, %v839
        %v841 = vpop.f32.mrb[0].mxu0
        %842 = vdwg.mxu0
        %v843 = vmax.f32 %v835, 0.0
        %v844 = vmax.f32 %v840, 0.0
        %v845 = vld [vmem:[#allocation12] sm:$0x1]
        %v846 = vld [vmem:[#allocation4] sm:$0x1]
        %848 = vset.pattern.permute.xlu0 0
        %849 = vperm.xlu0 %848, %v846
        %v850 = vpop.permute.xlu0 %849
        %v852 = vlaneseq
        %v853 = vshrl.u32 %v852, 7
        %v854 = vsub.s32 0, %v853
        %v855 = vrot.slane %v850, %v854
        %v857 = vsel %vm655, %v845, 0
        %v860 = vsel %vm655, %v843, 0
        %v863 = vsel %vm655, %v844, 0
        %865 = vmatprep.subr.mxu0 0.0
        %866 = vmatpush1.xpose.msra.mxu0 %v860
        %867 = vmatprep.subr.mxu0 0.0
        %868 = vmatpush1.xpose.msra.mxu0 %v863
        %869 = vmatprep.subr.mxu0 0.0
        %870 = vmatpush1.xpose.msra.mxu0 0.0
        %871 = vmatprep.subr.mxu0 0.0
        %872 = vmatpush1.xpose.msra.mxu0 0.0
        %873 = vmatprep.subr.mxu0 0.0
        %874 = vmatpush1.xpose.msra.mxu0 0.0
        %875 = vmatprep.subr.mxu0 0.0
        %876 = vmatpush1.xpose.msra.mxu0 0.0
        %877 = vmatprep.subr.mxu0 0.0
        %878 = vmatpush1.xpose.msra.mxu0 0.0
        %879 = vmatprep.subr.mxu0 0.0
        %880 = vmatpush1.xpose.msra.mxu0 0.0
        %881 = vmatprep.subr.mxu0 0.0
        %882 = vmatpush1.xpose.msra.mxu0 0.0
        %883 = vmatprep.subr.mxu0 0.0
        %884 = vmatpush1.xpose.msra.mxu0 0.0
        %885 = vmatprep.subr.mxu0 0.0
        %886 = vmatpush1.xpose.msra.mxu0 0.0
        %887 = vmatprep.subr.mxu0 0.0
        %888 = vmatpush1.xpose.msra.mxu0 0.0
        %889 = vmatprep.subr.mxu0 0.0
        %890 = vmatpush1.xpose.msra.mxu0 0.0
        %891 = vmatprep.subr.mxu0 0.0
        %892 = vmatpush1.xpose.msra.mxu0 0.0
        %893 = vmatprep.subr.mxu0 0.0
        %894 = vmatpush1.xpose.msra.mxu0 0.0
        %895 = vmatprep.subr.mxu0 0.0
        %896 = vmatpush1.xpose.msra.mxu0 0.0
        %897 = vmatprep.subr.mxu0 0.0
        %898 = vmatpush1.xpose.msra.mxu0 0.0
        %899 = vmatprep.subr.mxu0 0.0
        %900 = vmatpush1.xpose.msra.mxu0 0.0
        %901 = vmatprep.subr.mxu0 0.0
        %902 = vmatpush1.xpose.msra.mxu0 0.0
        %903 = vmatprep.subr.mxu0 0.0
        %904 = vmatpush1.xpose.msra.mxu0 0.0
        %905 = vmatprep.subr.mxu0 0.0
        %906 = vmatpush1.xpose.msra.mxu0 0.0
        %907 = vmatprep.subr.mxu0 0.0
        %908 = vmatpush1.xpose.msra.mxu0 0.0
        %909 = vmatprep.subr.mxu0 0.0
        %910 = vmatpush1.xpose.msra.mxu0 0.0
        %911 = vmatprep.subr.mxu0 0.0
        %912 = vmatpush1.xpose.msra.mxu0 0.0
        %913 = vmatprep.subr.mxu0 0.0
        %914 = vmatpush1.xpose.msra.mxu0 0.0
        %915 = vmatprep.subr.mxu0 0.0
        %916 = vmatpush1.xpose.msra.mxu0 0.0
        %917 = vmatprep.subr.mxu0 0.0
        %918 = vmatpush1.xpose.msra.mxu0 0.0
        %919 = vmatprep.subr.mxu0 0.0
        %920 = vmatpush1.xpose.msra.mxu0 0.0
        %921 = vmatprep.subr.mxu0 0.0
        %922 = vmatpush1.xpose.msra.mxu0 0.0
        %923 = vmatprep.subr.mxu0 0.0
        %924 = vmatpush1.xpose.msra.mxu0 0.0
        %925 = vmatprep.subr.mxu0 0.0
        %926 = vmatpush1.xpose.msra.mxu0 0.0
        %927 = vmatprep.subr.mxu0 0.0
        %928 = vmatpush1.xpose.msra.mxu0 0.0
        %929 = vmatprep.mubr.f32.mxu0 0.0
        %930 = vmatmul.mubr.f32.gmra.mrb[0].mxu0 %v857
        %v931 = vpop.f32.mrb[0].mxu0
        %v932 = vadd.f32 %v855, %v931
        %v933 = vpop.f32.mrb[0].mxu0
        %934 = vdwg.mxu0
        %vm935 = vcmask 122880
        %v936 = vsel %vm935, %v932, -inf
        %937 = vmax.xlane.f32.xlu0 %v936
        %v938 = vpop.xlane.xlu0 %937
        %v939 = vsub.f32 %v932, %v938
        %v940 = vmul.f32 %v939, 1.442695
        %v941 = vpow.pop %v940
        %v942 = vsel %vm935, %v941, 0.0
        %943 = vadd.xlane.f32.xlu0 %v942
        %v944 = vpop.xlane.xlu0 %943
        %v945 = vrcp.pop %v944
        %v946 = vmul.f32 %v941, %v945
        %947 = vst.msk [vmem:[#allocation3] sm:$0x1] %vm935, %v946
        %v949 = vsel %vm549, %v941, 0
        %951 = vmatprep.subr.mxu0 0.0
        %952 = vmatpush1.msra.mxu0 %v843
        %953 = vmatprep.subr.mxu0 0.0
        %954 = vmatpush1.msra.mxu0 %v844
        %955 = vmatprep.subr.mxu0 0.0
        %956 = vmatpush1.msra.mxu0 0.0
        %957 = vmatprep.subr.mxu0 0.0
        %958 = vmatpush1.msra.mxu0 0.0
        %959 = vmatprep.subr.mxu0 0.0
        %960 = vmatpush1.msra.mxu0 0.0
        %961 = vmatprep.subr.mxu0 0.0
        %962 = vmatpush1.msra.mxu0 0.0
        %963 = vmatprep.subr.mxu0 0.0
        %964 = vmatpush1.msra.mxu0 0.0
        %965 = vmatprep.subr.mxu0 0.0
        %966 = vmatpush1.msra.mxu0 0.0
        %967 = vmatprep.subr.mxu0 0.0
        %968 = vmatpush1.msra.mxu0 0.0
        %969 = vmatprep.subr.mxu0 0.0
        %970 = vmatpush1.msra.mxu0 0.0
        %971 = vmatprep.subr.mxu0 0.0
        %972 = vmatpush1.msra.mxu0 0.0
        %973 = vmatprep.subr.mxu0 0.0
        %974 = vmatpush1.msra.mxu0 0.0
        %975 = vmatprep.subr.mxu0 0.0
        %976 = vmatpush1.msra.mxu0 0.0
        %977 = vmatprep.subr.mxu0 0.0
        %978 = vmatpush1.msra.mxu0 0.0
        %979 = vmatprep.subr.mxu0 0.0
        %980 = vmatpush1.msra.mxu0 0.0
        %981 = vmatprep.subr.mxu0 0.0
        %982 = vmatpush1.msra.mxu0 0.0
        %983 = vmatprep.subr.mxu0 0.0
        %984 = vmatpush1.msra.mxu0 0.0
        %985 = vmatprep.subr.mxu0 0.0
        %986 = vmatpush1.msra.mxu0 0.0
        %987 = vmatprep.subr.mxu0 0.0
        %988 = vmatpush1.msra.mxu0 0.0
        %989 = vmatprep.subr.mxu0 0.0
        %990 = vmatpush1.msra.mxu0 0.0
        %991 = vmatprep.subr.mxu0 0.0
        %992 = vmatpush1.msra.mxu0 0.0
        %993 = vmatprep.subr.mxu0 0.0
        %994 = vmatpush1.msra.mxu0 0.0
        %995 = vmatprep.subr.mxu0 0.0
        %996 = vmatpush1.msra.mxu0 0.0
        %997 = vmatprep.subr.mxu0 0.0
        %998 = vmatpush1.msra.mxu0 0.0
        %999 = vmatprep.subr.mxu0 0.0
        %1000 = vmatpush1.msra.mxu0 0.0
        %1001 = vmatprep.subr.mxu0 0.0
        %1002 = vmatpush1.msra.mxu0 0.0
        %1003 = vmatprep.subr.mxu0 0.0
        %1004 = vmatpush1.msra.mxu0 0.0
        %1005 = vmatprep.subr.mxu0 0.0
        %1006 = vmatpush1.msra.mxu0 0.0
        %1007 = vmatprep.subr.mxu0 0.0
        %1008 = vmatpush1.msra.mxu0 0.0
        %1009 = vmatprep.subr.mxu0 0.0
        %1010 = vmatpush1.msra.mxu0 0.0
        %1011 = vmatprep.subr.mxu0 0.0
        %1012 = vmatpush1.msra.mxu0 0.0
        %1013 = vmatprep.subr.mxu0 0.0
        %1014 = vmatpush1.msra.mxu0 0.0
        %1015 = vmatprep.mubr.f32.mxu0 0.0
        %1016 = vmatmul.mubr.f32.gmra.mrb[0].mxu0 %v949
        %v1017 = vpop.f32.mrb[0].mxu0
        %v1018 = vadd.f32 0.0, %v1017
        %v1019 = vpop.f32.mrb[0].mxu0
        %1020 = vdwg.mxu0
        %v1021 = vmul.f32 %v1018, %v945
        %vm1022 = vcmask 253952
        %1023 = vst.msk [vmem:[#allocation2] sm:$0x1] %vm1022, %v1021
        %s1024 = scalar_lea.vmem %s467, 16 [#allocation6]
        %v1025 = vld [vmem:[%s1024] sm:$0xff]
        %v1026 = vld [vmem:[%s1024 + $0x8] sm:$0xff]
        %v1027 = vld [vmem:[%s4] sm:$0x1]
        %v1029 = vlaneseq
        %v1030 = vshrl.u32 %v1029, 7
        %v1031 = vsub.s32 0, %v1030
        %v1032 = vrot.slane %v1027, %v1031
        %v1035 = vsel %vm549, %v1025, 0
        %v1038 = vsel %vm549, %v1026, 0
        %1040 = vmatprep.subr.mxu0 0.0
        %1041 = vmatpush1.msra.mxu0 %v745
        %1042 = vmatprep.subr.mxu0 0.0
        %1043 = vmatpush1.msra.mxu0 %v750
        %1044 = vmatprep.subr.mxu0 0.0
        %1045 = vmatpush1.msra.mxu0 0.0
        %1046 = vmatprep.subr.mxu0 0.0
        %1047 = vmatpush1.msra.mxu0 0.0
        %1048 = vmatprep.subr.mxu0 0.0
        %1049 = vmatpush1.msra.mxu0 0.0
        %1050 = vmatprep.subr.mxu0 0.0
        %1051 = vmatpush1.msra.mxu0 0.0
        %1052 = vmatprep.subr.mxu0 0.0
        %1053 = vmatpush1.msra.mxu0 0.0
        %1054 = vmatprep.subr.mxu0 0.0
        %1055 = vmatpush1.msra.mxu0 0.0
        %1056 = vmatprep.subr.mxu0 0.0
        %1057 = vmatpush1.msra.mxu0 0.0
        %1058 = vmatprep.subr.mxu0 0.0
        %1059 = vmatpush1.msra.mxu0 0.0
        %1060 = vmatprep.subr.mxu0 0.0
        %1061 = vmatpush1.msra.mxu0 0.0
        %1062 = vmatprep.subr.mxu0 0.0
        %1063 = vmatpush1.msra.mxu0 0.0
        %1064 = vmatprep.subr.mxu0 0.0
        %1065 = vmatpush1.msra.mxu0 0.0
        %1066 = vmatprep.subr.mxu0 0.0
        %1067 = vmatpush1.msra.mxu0 0.0
        %1068 = vmatprep.subr.mxu0 0.0
        %1069 = vmatpush1.msra.mxu0 0.0
        %1070 = vmatprep.subr.mxu0 0.0
        %1071 = vmatpush1.msra.mxu0 0.0
        %1072 = vmatprep.subr.mxu0 0.0
        %1073 = vmatpush1.msra.mxu0 0.0
        %1074 = vmatprep.subr.mxu0 0.0
        %1075 = vmatpush1.msra.mxu0 0.0
        %1076 = vmatprep.subr.mxu0 0.0
        %1077 = vmatpush1.msra.mxu0 0.0
        %1078 = vmatprep.subr.mxu0 0.0
        %1079 = vmatpush1.msra.mxu0 0.0
        %1080 = vmatprep.subr.mxu0 0.0
        %1081 = vmatpush1.msra.mxu0 0.0
        %1082 = vmatprep.subr.mxu0 0.0
        %1083 = vmatpush1.msra.mxu0 0.0
        %1084 = vmatprep.subr.mxu0 0.0
        %1085 = vmatpush1.msra.mxu0 0.0
        %1086 = vmatprep.subr.mxu0 0.0
        %1087 = vmatpush1.msra.mxu0 0.0
        %1088 = vmatprep.subr.mxu0 0.0
        %1089 = vmatpush1.msra.mxu0 0.0
        %1090 = vmatprep.subr.mxu0 0.0
        %1091 = vmatpush1.msra.mxu0 0.0
        %1092 = vmatprep.subr.mxu0 0.0
        %1093 = vmatpush1.msra.mxu0 0.0
        %1094 = vmatprep.subr.mxu0 0.0
        %1095 = vmatpush1.msra.mxu0 0.0
        %1096 = vmatprep.subr.mxu0 0.0
        %1097 = vmatpush1.msra.mxu0 0.0
        %1098 = vmatprep.subr.mxu0 0.0
        %1099 = vmatpush1.msra.mxu0 0.0
        %1100 = vmatprep.subr.mxu0 0.0
        %1101 = vmatpush1.msra.mxu0 0.0
        %1102 = vmatprep.subr.mxu0 0.0
        %1103 = vmatpush1.msra.mxu0 0.0
        %1104 = vmatprep.mubr.f32.mxu0 0.0
        %1105 = vmatmul.mubr.f32.gmra.mrb[0].mxu0 %v1035
        %v1106 = vpop.f32.mrb[0].mxu0
        %v1107 = vadd.f32 %v1032, %v1106
        %v1108 = vpop.f32.mrb[0].mxu0
        %1109 = vmatprep.mubr.f32.mxu0 0.0
        %1110 = vmatmul.mubr.f32.gmra.mrb[0].mxu0 %v1038
        %v1111 = vpop.f32.mrb[0].mxu0
        %v1112 = vadd.f32 %v1032, %v1111
        %v1113 = vpop.f32.mrb[0].mxu0
        %1114 = vdwg.mxu0
        %v1115 = vmax.f32 %v1107, 0.0
        %v1116 = vmax.f32 %v1112, 0.0
        %v1117 = vld [vmem:[#allocation12] sm:$0x1]
        %v1118 = vld [vmem:[#allocation4] sm:$0x1]
        %1120 = vset.pattern.permute.xlu0 0
        %1121 = vperm.xlu0 %1120, %v1118
        %v1122 = vpop.permute.xlu0 %1121
        %v1124 = vlaneseq
        %v1125 = vshrl.u32 %v1124, 7
        %v1126 = vsub.s32 0, %v1125
        %v1127 = vrot.slane %v1122, %v1126
        %v1129 = vsel %vm655, %v1117, 0
        %v1132 = vsel %vm655, %v1115, 0
        %v1135 = vsel %vm655, %v1116, 0
        %1137 = vmatprep.subr.mxu0 0.0
        %1138 = vmatpush1.xpose.msra.mxu0 %v1132
        %1139 = vmatprep.subr.mxu0 0.0
        %1140 = vmatpush1.xpose.msra.mxu0 %v1135
        %1141 = vmatprep.subr.mxu0 0.0
        %1142 = vmatpush1.xpose.msra.mxu0 0.0
        %1143 = vmatprep.subr.mxu0 0.0
        %1144 = vmatpush1.xpose.msra.mxu0 0.0
        %1145 = vmatprep.subr.mxu0 0.0
        %1146 = vmatpush1.xpose.msra.mxu0 0.0
        %1147 = vmatprep.subr.mxu0 0.0
        %1148 = vmatpush1.xpose.msra.mxu0 0.0
        %1149 = vmatprep.subr.mxu0 0.0
        %1150 = vmatpush1.xpose.msra.mxu0 0.0
        %1151 = vmatprep.subr.mxu0 0.0
        %1152 = vmatpush1.xpose.msra.mxu0 0.0
        %1153 = vmatprep.subr.mxu0 0.0
        %1154 = vmatpush1.xpose.msra.mxu0 0.0
        %1155 = vmatprep.subr.mxu0 0.0
        %1156 = vmatpush1.xpose.msra.mxu0 0.0
        %1157 = vmatprep.subr.mxu0 0.0
        %1158 = vmatpush1.xpose.msra.mxu0 0.0
        %1159 = vmatprep.subr.mxu0 0.0
        %1160 = vmatpush1.xpose.msra.mxu0 0.0
        %1161 = vmatprep.subr.mxu0 0.0
        %1162 = vmatpush1.xpose.msra.mxu0 0.0
        %1163 = vmatprep.subr.mxu0 0.0
        %1164 = vmatpush1.xpose.msra.mxu0 0.0
        %1165 = vmatprep.subr.mxu0 0.0
        %1166 = vmatpush1.xpose.msra.mxu0 0.0
        %1167 = vmatprep.subr.mxu0 0.0
        %1168 = vmatpush1.xpose.msra.mxu0 0.0
        %1169 = vmatprep.subr.mxu0 0.0
        %1170 = vmatpush1.xpose.msra.mxu0 0.0
        %1171 = vmatprep.subr.mxu0 0.0
        %1172 = vmatpush1.xpose.msra.mxu0 0.0
        %1173 = vmatprep.subr.mxu0 0.0
        %1174 = vmatpush1.xpose.msra.mxu0 0.0
        %1175 = vmatprep.subr.mxu0 0.0
        %1176 = vmatpush1.xpose.msra.mxu0 0.0
        %1177 = vmatprep.subr.mxu0 0.0
        %1178 = vmatpush1.xpose.msra.mxu0 0.0
        %1179 = vmatprep.subr.mxu0 0.0
        %1180 = vmatpush1.xpose.msra.mxu0 0.0
        %1181 = vmatprep.subr.mxu0 0.0
        %1182 = vmatpush1.xpose.msra.mxu0 0.0
        %1183 = vmatprep.subr.mxu0 0.0
        %1184 = vmatpush1.xpose.msra.mxu0 0.0
        %1185 = vmatprep.subr.mxu0 0.0
        %1186 = vmatpush1.xpose.msra.mxu0 0.0
        %1187 = vmatprep.subr.mxu0 0.0
        %1188 = vmatpush1.xpose.msra.mxu0 0.0
        %1189 = vmatprep.subr.mxu0 0.0
        %1190 = vmatpush1.xpose.msra.mxu0 0.0
        %1191 = vmatprep.subr.mxu0 0.0
        %1192 = vmatpush1.xpose.msra.mxu0 0.0
        %1193 = vmatprep.subr.mxu0 0.0
        %1194 = vmatpush1.xpose.msra.mxu0 0.0
        %1195 = vmatprep.subr.mxu0 0.0
        %1196 = vmatpush1.xpose.msra.mxu0 0.0
        %1197 = vmatprep.subr.mxu0 0.0
        %1198 = vmatpush1.xpose.msra.mxu0 0.0
        %1199 = vmatprep.subr.mxu0 0.0
        %1200 = vmatpush1.xpose.msra.mxu0 0.0
        %1201 = vmatprep.mubr.f32.mxu0 0.0
        %1202 = vmatmul.mubr.f32.gmra.mrb[0].mxu0 %v1129
        %v1203 = vpop.f32.mrb[0].mxu0
        %v1204 = vadd.f32 %v1127, %v1203
        %v1205 = vpop.f32.mrb[0].mxu0
        %1206 = vdwg.mxu0
        %v1207 = vsel %vm935, %v1204, -inf
        %1208 = vmax.xlane.f32.xlu0 %v1207
        %v1209 = vpop.xlane.xlu0 %1208
        %v1210 = vsub.f32 %v1204, %v1209
        %v1211 = vmul.f32 %v1210, 1.442695
        %v1212 = vpow.pop %v1211
        %v1213 = vsel %vm935, %v1212, 0.0
        %1214 = vadd.xlane.f32.xlu0 %v1213
        %v1215 = vpop.xlane.xlu0 %1214
        %v1216 = vrcp.pop %v1215
        %v1217 = vmul.f32 %v1212, %v1216
        %1218 = vst.msk [vmem:[#allocation3 + $0x1] sm:$0x1] %vm935, %v1217
        %v1220 = vsel %vm549, %v1212, 0
        %1222 = vmatprep.subr.mxu0 0.0
        %1223 = vmatpush1.msra.mxu0 %v1115
        %1224 = vmatprep.subr.mxu0 0.0
        %1225 = vmatpush1.msra.mxu0 %v1116
        %1226 = vmatprep.subr.mxu0 0.0
        %1227 = vmatpush1.msra.mxu0 0.0
        %1228 = vmatprep.subr.mxu0 0.0
        %1229 = vmatpush1.msra.mxu0 0.0
        %1230 = vmatprep.subr.mxu0 0.0
        %1231 = vmatpush1.msra.mxu0 0.0
        %1232 = vmatprep.subr.mxu0 0.0
        %1233 = vmatpush1.msra.mxu0 0.0
        %1234 = vmatprep.subr.mxu0 0.0
        %1235 = vmatpush1.msra.mxu0 0.0
        %1236 = vmatprep.subr.mxu0 0.0
        %1237 = vmatpush1.msra.mxu0 0.0
        %1238 = vmatprep.subr.mxu0 0.0
        %1239 = vmatpush1.msra.mxu0 0.0
        %1240 = vmatprep.subr.mxu0 0.0
        %1241 = vmatpush1.msra.mxu0 0.0
        %1242 = vmatprep.subr.mxu0 0.0
        %1243 = vmatpush1.msra.mxu0 0.0
        %1244 = vmatprep.subr.mxu0 0.0
        %1245 = vmatpush1.msra.mxu0 0.0
        %1246 = vmatprep.subr.mxu0 0.0
        %1247 = vmatpush1.msra.mxu0 0.0
        %1248 = vmatprep.subr.mxu0 0.0
        %1249 = vmatpush1.msra.mxu0 0.0
        %1250 = vmatprep.subr.mxu0 0.0
        %1251 = vmatpush1.msra.mxu0 0.0
        %1252 = vmatprep.subr.mxu0 0.0
        %1253 = vmatpush1.msra.mxu0 0.0
        %1254 = vmatprep.subr.mxu0 0.0
        %1255 = vmatpush1.msra.mxu0 0.0
        %1256 = vmatprep.subr.mxu0 0.0
        %1257 = vmatpush1.msra.mxu0 0.0
        %1258 = vmatprep.subr.mxu0 0.0
        %1259 = vmatpush1.msra.mxu0 0.0
        %1260 = vmatprep.subr.mxu0 0.0
        %1261 = vmatpush1.msra.mxu0 0.0
        %1262 = vmatprep.subr.mxu0 0.0
        %1263 = vmatpush1.msra.mxu0 0.0
        %1264 = vmatprep.subr.mxu0 0.0
        %1265 = vmatpush1.msra.mxu0 0.0
        %1266 = vmatprep.subr.mxu0 0.0
        %1267 = vmatpush1.msra.mxu0 0.0
        %1268 = vmatprep.subr.mxu0 0.0
        %1269 = vmatpush1.msra.mxu0 0.0
        %1270 = vmatprep.subr.mxu0 0.0
        %1271 = vmatpush1.msra.mxu0 0.0
        %1272 = vmatprep.subr.mxu0 0.0
        %1273 = vmatpush1.msra.mxu0 0.0
        %1274 = vmatprep.subr.mxu0 0.0
        %1275 = vmatpush1.msra.mxu0 0.0
        %1276 = vmatprep.subr.mxu0 0.0
        %1277 = vmatpush1.msra.mxu0 0.0
        %1278 = vmatprep.subr.mxu0 0.0
        %1279 = vmatpush1.msra.mxu0 0.0
        %1280 = vmatprep.subr.mxu0 0.0
        %1281 = vmatpush1.msra.mxu0 0.0
        %1282 = vmatprep.subr.mxu0 0.0
        %1283 = vmatpush1.msra.mxu0 0.0
        %1284 = vmatprep.subr.mxu0 0.0
        %1285 = vmatpush1.msra.mxu0 0.0
        %1286 = vmatprep.mubr.f32.mxu0 0.0
        %1287 = vmatmul.mubr.f32.gmra.mrb[0].mxu0 %v1220
        %v1288 = vpop.f32.mrb[0].mxu0
        %v1289 = vadd.f32 0.0, %v1288
        %v1290 = vpop.f32.mrb[0].mxu0
        %1291 = vdwg.mxu0
        %v1292 = vmul.f32 %v1289, %v1216
        %1293 = vst.msk [vmem:[#allocation2 + $0x1] sm:$0x1] %vm1022, %v1292
        %v1294 = vld [vmem:[#allocation3] sm:$0x3]
        %vm1295 = vcmask 123904
        %1296 = vst.msk [vmem:[%s534] sm:$0x3] %vm1295, %v1294
        %v1297 = vld [vmem:[#allocation2] sm:$0x3]
        %v1298 = vld [vmem:[%s9] sm:$0xff]
        %v1299 = vld [vmem:[%s9 + $0x8] sm:$0xff]
        %v1300 = vld [vmem:[%s9 + $0x10] sm:$0xff]
        %v1301 = vld [vmem:[%s9 + $0x18] sm:$0xff]
        %v1302 = vld [vmem:[%s10] sm:$0x1]
        %v1304 = vlaneseq
        %v1305 = vshrl.u32 %v1304, 7
        %v1306 = vsub.s32 0, %v1305
        %v1307 = vrot.slane %v1302, %v1306
        %v1310 = vsel %vm655, %v1297, 0
        %1312 = vmatprep.subr.mxu0 0.0
        %1313 = vmatpush1.msra.mxu0 %v1298
        %1314 = vmatprep.subr.mxu0 0.0
        %1315 = vmatpush1.msra.mxu0 %v1299
        %1316 = vmatprep.subr.mxu0 0.0
        %1317 = vmatpush1.msra.mxu0 %v1300
        %1318 = vmatprep.subr.mxu0 0.0
        %1319 = vmatpush1.msra.mxu0 %v1301
        %1320 = vmatprep.subr.mxu0 0.0
        %1321 = vmatpush1.msra.mxu0 0.0
        %1322 = vmatprep.subr.mxu0 0.0
        %1323 = vmatpush1.msra.mxu0 0.0
        %1324 = vmatprep.subr.mxu0 0.0
        %1325 = vmatpush1.msra.mxu0 0.0
        %1326 = vmatprep.subr.mxu0 0.0
        %1327 = vmatpush1.msra.mxu0 0.0
        %1328 = vmatprep.subr.mxu0 0.0
        %1329 = vmatpush1.msra.mxu0 0.0
        %1330 = vmatprep.subr.mxu0 0.0
        %1331 = vmatpush1.msra.mxu0 0.0
        %1332 = vmatprep.subr.mxu0 0.0
        %1333 = vmatpush1.msra.mxu0 0.0
        %1334 = vmatprep.subr.mxu0 0.0
        %1335 = vmatpush1.msra.mxu0 0.0
        %1336 = vmatprep.subr.mxu0 0.0
        %1337 = vmatpush1.msra.mxu0 0.0
        %1338 = vmatprep.subr.mxu0 0.0
        %1339 = vmatpush1.msra.mxu0 0.0
        %1340 = vmatprep.subr.mxu0 0.0
        %1341 = vmatpush1.msra.mxu0 0.0
        %1342 = vmatprep.subr.mxu0 0.0
        %1343 = vmatpush1.msra.mxu0 0.0
        %1344 = vmatprep.subr.mxu0 0.0
        %1345 = vmatpush1.msra.mxu0 0.0
        %1346 = vmatprep.subr.mxu0 0.0
        %1347 = vmatpush1.msra.mxu0 0.0
        %1348 = vmatprep.subr.mxu0 0.0
        %1349 = vmatpush1.msra.mxu0 0.0
        %1350 = vmatprep.subr.mxu0 0.0
        %1351 = vmatpush1.msra.mxu0 0.0
        %1352 = vmatprep.subr.mxu0 0.0
        %1353 = vmatpush1.msra.mxu0 0.0
        %1354 = vmatprep.subr.mxu0 0.0
        %1355 = vmatpush1.msra.mxu0 0.0
        %1356 = vmatprep.subr.mxu0 0.0
        %1357 = vmatpush1.msra.mxu0 0.0
        %1358 = vmatprep.subr.mxu0 0.0
        %1359 = vmatpush1.msra.mxu0 0.0
        %1360 = vmatprep.subr.mxu0 0.0
        %1361 = vmatpush1.msra.mxu0 0.0
        %1362 = vmatprep.subr.mxu0 0.0
        %1363 = vmatpush1.msra.mxu0 0.0
        %1364 = vmatprep.subr.mxu0 0.0
        %1365 = vmatpush1.msra.mxu0 0.0
        %1366 = vmatprep.subr.mxu0 0.0
        %1367 = vmatpush1.msra.mxu0 0.0
        %1368 = vmatprep.subr.mxu0 0.0
        %1369 = vmatpush1.msra.mxu0 0.0
        %1370 = vmatprep.subr.mxu0 0.0
        %1371 = vmatpush1.msra.mxu0 0.0
        %1372 = vmatprep.subr.mxu0 0.0
        %1373 = vmatpush1.msra.mxu0 0.0
        %1374 = vmatprep.subr.mxu0 0.0
        %1375 = vmatpush1.msra.mxu0 0.0
        %1376 = vmatprep.mubr.f32.mxu0 0.0
        %1377 = vmatmul.mubr.f32.gmra.mrb[0].mxu0 %v1310
        %v1378 = vpop.f32.mrb[0].mxu0
        %v1379 = vadd.f32 %v1307, %v1378
        %v1380 = vpop.f32.mrb[0].mxu0
        %1381 = vdwg.mxu0
        %vm1382 = vcmask 254976
        %1383 = vst.msk [vmem:[%s527] sm:$0x3] %vm1382, %v1379
        %v1384 = vld [vmem:[#allocation14] sm:$0x1]
        %v1385 = vld [vmem:[#allocation5] sm:$0x1]
        %1387 = vset.pattern.permute.xlu0 0
        %1388 = vperm.xlu0 %1387, %v1385
        %v1389 = vpop.permute.xlu0 %1388
        %v1391 = vlaneseq
        %v1392 = vshrl.u32 %v1391, 7
        %v1393 = vsub.s32 0, %v1392
        %v1394 = vrot.slane %v1389, %v1393
        %v1396 = vsel %vm655, %v1384, 0
        %1398 = vmatprep.subr.mxu0 0.0
        %1399 = vmatpush1.xpose.msra.mxu0 %v1310
        %1400 = vmatprep.subr.mxu0 0.0
        %1401 = vmatpush1.xpose.msra.mxu0 0.0
        %1402 = vmatprep.subr.mxu0 0.0
        %1403 = vmatpush1.xpose.msra.mxu0 0.0
        %1404 = vmatprep.subr.mxu0 0.0
        %1405 = vmatpush1.xpose.msra.mxu0 0.0
        %1406 = vmatprep.subr.mxu0 0.0
        %1407 = vmatpush1.xpose.msra.mxu0 0.0
        %1408 = vmatprep.subr.mxu0 0.0
        %1409 = vmatpush1.xpose.msra.mxu0 0.0
        %1410 = vmatprep.subr.mxu0 0.0
        %1411 = vmatpush1.xpose.msra.mxu0 0.0
        %1412 = vmatprep.subr.mxu0 0.0
        %1413 = vmatpush1.xpose.msra.mxu0 0.0
        %1414 = vmatprep.subr.mxu0 0.0
        %1415 = vmatpush1.xpose.msra.mxu0 0.0
        %1416 = vmatprep.subr.mxu0 0.0
        %1417 = vmatpush1.xpose.msra.mxu0 0.0
        %1418 = vmatprep.subr.mxu0 0.0
        %1419 = vmatpush1.xpose.msra.mxu0 0.0
        %1420 = vmatprep.subr.mxu0 0.0
        %1421 = vmatpush1.xpose.msra.mxu0 0.0
        %1422 = vmatprep.subr.mxu0 0.0
        %1423 = vmatpush1.xpose.msra.mxu0 0.0
        %1424 = vmatprep.subr.mxu0 0.0
        %1425 = vmatpush1.xpose.msra.mxu0 0.0
        %1426 = vmatprep.subr.mxu0 0.0
        %1427 = vmatpush1.xpose.msra.mxu0 0.0
        %1428 = vmatprep.subr.mxu0 0.0
        %1429 = vmatpush1.xpose.msra.mxu0 0.0
        %1430 = vmatprep.subr.mxu0 0.0
        %1431 = vmatpush1.xpose.msra.mxu0 0.0
        %1432 = vmatprep.subr.mxu0 0.0
        %1433 = vmatpush1.xpose.msra.mxu0 0.0
        %1434 = vmatprep.subr.mxu0 0.0
        %1435 = vmatpush1.xpose.msra.mxu0 0.0
        %1436 = vmatprep.subr.mxu0 0.0
        %1437 = vmatpush1.xpose.msra.mxu0 0.0
        %1438 = vmatprep.subr.mxu0 0.0
        %1439 = vmatpush1.xpose.msra.mxu0 0.0
        %1440 = vmatprep.subr.mxu0 0.0
        %1441 = vmatpush1.xpose.msra.mxu0 0.0
        %1442 = vmatprep.subr.mxu0 0.0
        %1443 = vmatpush1.xpose.msra.mxu0 0.0
        %1444 = vmatprep.subr.mxu0 0.0
        %1445 = vmatpush1.xpose.msra.mxu0 0.0
        %1446 = vmatprep.subr.mxu0 0.0
        %1447 = vmatpush1.xpose.msra.mxu0 0.0
        %1448 = vmatprep.subr.mxu0 0.0
        %1449 = vmatpush1.xpose.msra.mxu0 0.0
        %1450 = vmatprep.subr.mxu0 0.0
        %1451 = vmatpush1.xpose.msra.mxu0 0.0
        %1452 = vmatprep.subr.mxu0 0.0
        %1453 = vmatpush1.xpose.msra.mxu0 0.0
        %1454 = vmatprep.subr.mxu0 0.0
        %1455 = vmatpush1.xpose.msra.mxu0 0.0
        %1456 = vmatprep.subr.mxu0 0.0
        %1457 = vmatpush1.xpose.msra.mxu0 0.0
        %1458 = vmatprep.subr.mxu0 0.0
        %1459 = vmatpush1.xpose.msra.mxu0 0.0
        %1460 = vmatprep.subr.mxu0 0.0
        %1461 = vmatpush1.xpose.msra.mxu0 0.0
        %1462 = vmatprep.mubr.f32.mxu0 0.0
        %1463 = vmatmul.mubr.f32.gmra.mrb[0].mxu0 %v1396
        %v1464 = vpop.f32.mrb[0].mxu0
        %v1465 = vadd.f32 %v1394, %v1464
        %v1466 = vpop.f32.mrb[0].mxu0
        %1467 = vdwg.mxu0
        %v1468 = vxor.u32 %v1465, 2147483648
        %v1469 = vmul.f32 %v1468, 1.442695
        %v1470 = vpow.pop %v1469
        %v1471 = vadd.f32 %v1470, 1.0
        %v1472 = vrcp.pop %v1471
        %v1473 = vmul.f32 1.0, %v1472
        %vm1474 = vcmask 8192
        %1475 = vst.msk [vmem:[%s520] sm:$0x1] %vm1474, %v1473
        %s1476 = sand.u32 %s284, 1
        %s1477 = scalar_lea.sflag [#allocation8], %s1476
        %s1478 = sand.u32 %s284, 1
        %s1479 = scalar_lea.vmem [#allocation15], %s1478
        %s1480 = sand.u32 %s40, 1
        %s1481 = scalar_lea.sflag [#allocation17], %s1480
        %s1482 = sand.u32 %s310, 1
        %s1483 = smul.addr %s1482, 2
        %s1484 = scalar_lea.vmem [#allocation16], %s1483
        %s1485 = sand.u32 %s40, 1
        %s1486 = scalar_lea.sflag [#allocation17], %s1485
        %s1487 = sand.u32 %s336, 1
        %s1488 = smul.addr %s1487, 2
        %s1489 = scalar_lea.vmem [#allocation18], %s1488
        // Predicated region
        $region85: #{tpu_custom_call.1} parent=63 // pred_check
          %p1490 = pneg %p294
        $region86: #{tpu_custom_call.1} parent=63 // pred_check_branch
          %1492 = sbr.rel (%p1490) target = $region88
        $region87: #{tpu_custom_call.1} parent=63 // pred_region
          %s1494 = ssub.s32 16, 16
          %1495 = vsyncadd %s1477, %s1494
          %s1496 = smul.addr %s40, 16
          %s1497 = scalar_lea.hbm %s11, %s1496
          %s1499 = sshll.u32 %s1479, 4
          %s1500 = int_to_ptr.vmem [resolvable:$true] %s1499
          %1502 = dma.vmem_to_hbm [thread:$0]  %s1500, 16, %s1497, %s1477
        $region88: #{tpu_custom_call.1} parent=63 // pred_fallthru
          _
        // Predicated region
        $region89: #{tpu_custom_call.1} parent=63 // pred_check
          %p1503 = pneg %p320
        $region90: #{tpu_custom_call.1} parent=63 // pred_check_branch
          %1505 = sbr.rel (%p1503) target = $region92
        $region91: #{tpu_custom_call.1} parent=63 // pred_region
          %s1507 = ssub.s32 32, 32
          %1508 = vsyncadd %s1481, %s1507
          %s1509 = smul.addr %s40, 32
          %s1510 = scalar_lea.hbm %s12, %s1509
          %s1512 = sshll.u32 %s1484, 4
          %s1513 = int_to_ptr.vmem [resolvable:$true] %s1512
          %1515 = dma.vmem_to_hbm [thread:$0]  %s1513, 32, %s1510, %s1481
        $region92: #{tpu_custom_call.1} parent=63 // pred_fallthru
          _
        // Predicated region
        $region93: #{tpu_custom_call.1} parent=63 // pred_check
          %p1516 = pneg %p346
        $region94: #{tpu_custom_call.1} parent=63 // pred_check_branch
          %1518 = sbr.rel (%p1516) target = $region96
        $region95: #{tpu_custom_call.1} parent=63 // pred_region
          %s1520 = ssub.s32 32, 32
          %1521 = vsyncadd %s1486, %s1520
          %s1522 = smul.addr %s40, 32
          %s1523 = scalar_lea.hbm %s13, %s1522
          %s1525 = sshll.u32 %s1489, 4
          %s1526 = int_to_ptr.vmem [resolvable:$true] %s1525
          %1528 = dma.vmem_to_hbm [thread:$0]  %s1526, 32, %s1523, %s1486
        $region96: #{tpu_custom_call.1} parent=63 // pred_fallthru
          _
      $region64: #{tpu_custom_call.1} parent=5 // pred_fallthru
        _
      %p1529 = scmp.le.s32.totalorder 2, %s35
      // Predicated region
      $region97: #{tpu_custom_call.1} parent=5 // pred_check
        %p1530 = pneg %p1529
      $region98: #{tpu_custom_call.1} parent=5 // pred_check_branch
        %1532 = sbr.rel (%p1530) target = $region100
      $region99: #{tpu_custom_call.1} parent=5 // pred_region
        %s1533 = ssub.s32 %s35, 2
        // Predicated region
        $region101: #{tpu_custom_call.1} parent=99 // pred_check
          %p1534 = pneg %p300
        $region102: #{tpu_custom_call.1} parent=99 // pred_check_branch
          %1536 = sbr.rel (%p1534) target = $region104
        $region103: #{tpu_custom_call.1} parent=99 // pred_region
          %s1537 = sand.u32 %s285, 1
          %s1538 = scalar_lea.sflag [#allocation8], %s1537
          %s1539 = sand.u32 %s285, 1
          %s1540 = scalar_lea.vmem [#allocation15], %s1539
          %1541 = dma.done %s1538, 16
        $region104: #{tpu_custom_call.1} parent=99 // pred_fallthru
          _
        // Predicated region
        $region105: #{tpu_custom_call.1} parent=99 // pred_check
          %p1542 = pneg %p326
        $region106: #{tpu_custom_call.1} parent=99 // pred_check_branch
          %1544 = sbr.rel (%p1542) target = $region108
        $region107: #{tpu_custom_call.1} parent=99 // pred_region
          %s1545 = sand.u32 %s41, 1
          %s1546 = scalar_lea.sflag [#allocation17], %s1545
          %s1547 = sand.u32 %s311, 1
          %s1548 = smul.addr %s1547, 2
          %s1549 = scalar_lea.vmem [#allocation16], %s1548
          %1550 = dma.done %s1546, 32
        $region108: #{tpu_custom_call.1} parent=99 // pred_fallthru
          _
        // Predicated region
        $region109: #{tpu_custom_call.1} parent=99 // pred_check
          %p1551 = pneg %p352
        $region110: #{tpu_custom_call.1} parent=99 // pred_check_branch
          %1553 = sbr.rel (%p1551) target = $region112
        $region111: #{tpu_custom_call.1} parent=99 // pred_region
          %s1554 = sand.u32 %s41, 1
          %s1555 = scalar_lea.sflag [#allocation17], %s1554
          %s1556 = sand.u32 %s337, 1
          %s1557 = smul.addr %s1556, 2
          %s1558 = scalar_lea.vmem [#allocation18], %s1557
          %1559 = dma.done %s1555, 32
        $region112: #{tpu_custom_call.1} parent=99 // pred_fallthru
          _
      $region100: #{tpu_custom_call.1} parent=5 // pred_fallthru
        _
    $region6: #{tpu_custom_call.1} parent=1 // loop_footer
      %s39 = sadd.s32 1, %s35
    $region7: #{tpu_custom_call.1} parent=1 // loop_footer_branch
      %34 = sbr.rel target = $region3
    $region8: #{tpu_custom_call.1} parent=1 // loop_exit
      _
    %1560 = vsyncpa [#allocation7], 1
    %s1561 = scalar_lea.sflag [#allocation7], 1
    %1562 = vsyncpa %s1561, 1
    %1563 = vsyncpa [#allocation10], 1
    %1564 = vsyncpa [#allocation13], 1
    %1565 = vsyncpa [#allocation8], 1
    %s1566 = scalar_lea.sflag [#allocation8], 1
    %1567 = vsyncpa %s1566, 1
    %1568 = vsyncpa [#allocation17], 1
    %s1569 = scalar_lea.sflag [#allocation17], 1
    %1570 = vsyncpa %s1569, 1

</llo_original>
